<compile_context>
chip_gen: v7x
topology: tpu7x:2x2x1
jax: 0.10.0
libtpu: 0.0.40
codegen_flags: <defaults>
</compile_context>

<pallas_src>
import functools
import math

import jax
import jax.numpy as jnp
from jax.experimental import pallas as pl
from jax.experimental.pallas import tpu as pltpu


# ----------------------------- activation helpers ---------------------------
# Shared by the kernel and the pure-JAX reference so the formulas match.

def _sigmoid(v):
    # Stable sigmoid via tanh (EUP op); avoids exp(-v) overflow for large |v|.
    return 0.5 * (jnp.tanh(0.5 * v) + 1.0)


def _silu(v):
    return v * _sigmoid(v)


def _softplus(v):
    # Numerically stable softplus (plain log: guaranteed Mosaic lowering).
    return jnp.maximum(v, 0.0) + jnp.log(1.0 + jnp.exp(-jnp.abs(v)))


# ------------------------------- fused kernel -------------------------------

def mamba_fused_kernel(x_ref, wnorm_ref, wnormf_ref, wlm_ref,
                       win_ref, bin_ref, wconv_ref, bconv_ref,
                       wx_ref, wdt_ref, bdt_ref, alog_ref, dpar_ref, wout_ref,
                       o_ref, x_sc, *, seq_len, layer_axis):
    M, _ = x_ref.shape                 # rows in this block (L or B*L)
    K, ED = wconv_ref.shape
    N = alog_ref.shape[0]
    R = wdt_ref.shape[0]
    nb = M // seq_len                  # number of sequences packed into M

    layer = pl.program_id(layer_axis)
    n_layers = pl.num_programs(layer_axis)

    # Residual stream stays resident in VMEM across the (sequential) layer axis.
    @pl.when(layer == 0)
    def _():
        x_sc[...] = x_ref[...]
        # Guarded init: the output block keeps the same index across all layer
        # steps and is only computed on the last one; zero it once so an early
        # writeback can never expose uninitialized VMEM.
        o_ref[...] = jnp.zeros_like(o_ref)

    x_res = x_sc[...]                                               # (M, D) f32

    # ---- shared pre-layer RMSNorm ----
    ms = jnp.mean(x_res * x_res, axis=-1, keepdims=True)
    xn = (x_res * jax.lax.rsqrt(ms + 1e-5) * wnorm_ref[...]).astype(jnp.bfloat16)

    # ---- fused in_proj: one lane-dense (D, 2*ED) bf16 matmul, f32 accumulate
    xz = jnp.dot(xn, win_ref[...], preferred_element_type=jnp.float32) + bin_ref[...]
    xp = xz[:, :ED]                                                 # (M, ED) f32
    z = xz[:, ED:]                                                  # (M, ED) f32

    # ---- causal depthwise conv1d: K shifted taps via pltpu.roll (XLU) + iota
    #      mask (covers both the causal zero-pad and sequence boundaries when
    #      several sequences share the M rows) + VPU FMAs.  No pad scratch.
    wc = wconv_ref[...]                                             # (K, ED)
    pos = jax.lax.broadcasted_iota(jnp.int32, (nb, seq_len, ED), 1).reshape(M, ED)
    acc = wc[K - 1:K, :] * xp + bconv_ref[...]                      # tap with shift 0
    for k in range(K - 1):
        s = K - 1 - k                                               # this tap's shift
        tap = pltpu.roll(xp, s, 0)                                  # rows move down by s
        tap = jnp.where(pos >= s, tap, 0.0)                         # zero wrapped rows
        acc = acc + wc[k:k + 1, :] * tap
    xs = _silu(acc)                                                 # (M, ED) f32

    # ---- fused x_proj (delta_r | B | C), then dt_proj -> delta ----
    dbc = jnp.dot(xs.astype(jnp.bfloat16), wx_ref[...],
                  preferred_element_type=jnp.float32)               # (M, R+2N)
    dr = dbc[:, :R].astype(jnp.bfloat16)
    Bm = dbc[:, R:R + N]                                            # (M, N)
    Cm = dbc[:, R + N:R + 2 * N]                                    # (M, N)
    delta = _softplus(jnp.dot(dr, wdt_ref[...],
                              preferred_element_type=jnp.float32) + bdt_ref[...])

    # ---- selective scan ----
    A_neg = -jnp.exp(alog_ref[...])                                 # (N, ED)
    dx = delta * xs                                                 # (M, ED)
    # One batched EUP push for all N states (instead of N small exp calls).
    dA = jnp.exp(delta[None, :, :] * A_neg[:, None, :])             # (N, M, ED)

    y = dpar_ref[...] * xs                                          # (M, ED)
    for n in range(N):
        dA_n = dA[n]                                                # (M, ED)
        bx_n = dx * Bm[:, n:n + 1]                                  # (M, ED)
        rows = []
        for b in range(nb):                                         # per sequence
            h = jnp.zeros((1, ED), jnp.float32)
            for t in range(seq_len):
                r = b * seq_len + t
                h = dA_n[r:r + 1, :] * h + bx_n[r:r + 1, :]
                rows.append(h)
        hs_n = jnp.concatenate(rows, axis=0)                        # (M, ED), registers
        y = y + Cm[:, n:n + 1] * hs_n
    # TODO(synk): for long L replace the unrolled serial recurrence with an
    # associative (Blelloch) scan over the sublane axis (pltpu.roll + iota mask,
    # log2(L) full-vreg FMA steps) and tile L on a grid axis.

    # ---- SiLU gate, out_proj, residual (residual stays in VMEM) ----
    out = y * _silu(z)
    x_new = x_res + jnp.dot(out.astype(jnp.bfloat16), wout_ref[...],
                            preferred_element_type=jnp.float32)
    x_sc[...] = x_new

    # ---- final RMSNorm + lm_head fused into the last layer step ----
    @pl.when(layer == n_layers - 1)
    def _():
        msf = jnp.mean(x_new * x_new, axis=-1, keepdims=True)
        xnf = (x_new * jax.lax.rsqrt(msf + 1e-5) * wnormf_ref[...]).astype(jnp.bfloat16)
        o_ref[...] = jnp.dot(xnf, wlm_ref[...], preferred_element_type=jnp.float32)


# --------------------------------- wrapper -----------------------------------

def mamba_forward(tokens, params, *, fold_batch=True):
    """Full Mamba forward in one pallas_call.

    fold_batch=True : grid=(n_layers,); batch folded into the matmul M dim
                      (recommended for single-TensorCore v5e/v6e).
    fold_batch=False: grid=(batch, n_layers), batch axis "parallel"
                      (keeps both v7x TensorCores busy).
    """
    # TODO(synk): embedding token gather stays outside the kernel (no clean
    # Pallas hot path for a small-vocab row gather).
    x = jnp.take(params['embedding'], tokens, axis=0).astype(jnp.float32)  # (B,L,D)
    B, L, D = x.shape
    nl = params['w_in'].shape[0]
    V = params['wlm_t'].shape[1]

    # Lane-dense logits: pad the vocab to a multiple of 128 so the only HBM
    # output store is full-lane; slice back outside the kernel.
    Vp = ((V + 127) // 128) * 128
    wlm_pad = jnp.pad(params['wlm_t'], ((0, 0), (0, Vp - V)))

    layer_keys = ['w_in', 'b_in', 'wconv', 'bconv', 'w_x', 'w_dt', 'b_dt',
                  'alog', 'dpar', 'w_out']
    layer_args = [params[k] for k in layer_keys]

    if fold_batch:
        M = B * L
        x_in = x.reshape(M, D)
        grid = (nl,)
        layer_axis = 0
        dims = ("arbitrary",)

        def stacked_spec(a):
            trail = a.shape[1:]
            return pl.BlockSpec((None,) + trail,
                                lambda l, _n=len(trail): (l,) + (0,) * _n)

        def const_spec(a):
            return pl.BlockSpec(a.shape, lambda l, _n=a.ndim: (0,) * _n)

        x_spec = pl.BlockSpec((M, D), lambda l: (0, 0))
        out_spec = pl.BlockSpec((M, Vp), lambda l: (0, 0))
        out_shape = jax.ShapeDtypeStruct((M, Vp), jnp.float32)
        scratch = [pltpu.VMEM((M, D), jnp.float32)]          # residual stream
    else:
        x_in = x
        grid = (B, nl)
        layer_axis = 1
        dims = ("parallel", "arbitrary")

        def stacked_spec(a):
            trail = a.shape[1:]
            return pl.BlockSpec((None,) + trail,
                                lambda b, l, _n=len(trail): (l,) + (0,) * _n)

        def const_spec(a):
            return pl.BlockSpec(a.shape, lambda b, l, _n=a.ndim: (0,) * _n)

        x_spec = pl.BlockSpec((None, L, D), lambda b, l: (b, 0, 0))
        out_spec = pl.BlockSpec((None, L, Vp), lambda b, l: (b, 0, 0))
        out_shape = jax.ShapeDtypeStruct((B, L, Vp), jnp.float32)
        scratch = [pltpu.VMEM((L, D), jnp.float32)]          # residual stream

    # TODO(synk): at production D/V/L sizes add a vocab-tile grid axis for
    # wlm/o_ref (v7x 64 MiB VMEM) instead of keeping the whole lm_head resident,
    # and set vmem_limit_bytes accordingly.
    in_specs = ([x_spec,
                 const_spec(params['wnorm']),
                 const_spec(params['wnorm_f']),
                 const_spec(wlm_pad)] +
                [stacked_spec(a) for a in layer_args])

    kernel = functools.partial(mamba_fused_kernel, seq_len=L, layer_axis=layer_axis)

    out = pl.pallas_call(
        kernel,
        out_shape=out_shape,
        grid=grid,
        in_specs=in_specs,
        out_specs=out_spec,
        scratch_shapes=scratch,
        # If profiling at production size shows the per-layer weight fetch
        # exposed on v5e/v6e, add pipeline_mode=pl.Buffered(3) to stacked_spec.
        compiler_params=pltpu.CompilerParams(dimension_semantics=dims),
    )(x_in, params['wnorm'], params['wnorm_f'], wlm_pad, *layer_args)

    if fold_batch:
        out = out.reshape(B, L, Vp)
    return out[:, :, :V]


# ---------------------------- deterministic init -----------------------------

def init_params(key, *, D, expand, K, dt_rank, N, V, n_layers,
                dt_max=0.1, dt_min=1e-3, dt_init_floor=1e-4, dt_scale=1.0):
    ED = expand * D
    keys = jax.random.split(key, 2 + n_layers)

    emb = 0.1 * jax.random.normal(keys[0], (V, D), jnp.float32)
    emb = emb.at[0].set(0.0)                      # padding_idx=0 -> zero row
    wlm = (1.0 / math.sqrt(D)) * jax.random.uniform(keys[1], (V, D), jnp.float32,
                                                    -1.0, 1.0)

    def u(k, shape, fan_in):
        bound = 1.0 / math.sqrt(fan_in)
        return jax.random.uniform(k, shape, jnp.float32, -bound, bound)

    per_layer = []
    for li in range(n_layers):
        lk = jax.random.split(keys[2 + li], 8)
        w_in = u(lk[0], (2 * ED, D), D)           # torch Linear weight (out, in)
        b_in = u(lk[1], (2 * ED,), D)
        w_conv = u(lk[2], (ED, K), K)             # depthwise: fan_in = K
        b_conv = u(lk[3], (ED,), K)
        w_x = u(lk[4], (dt_rank + 2 * N, ED), ED)
        dt_std = dt_rank ** -0.5 * dt_scale
        w_dt = jax.random.uniform(lk[5], (ED, dt_rank), jnp.float32, -dt_std, dt_std)
        dtv = jnp.exp(jax.random.uniform(lk[6], (ED,), jnp.float32)
                      * (math.log(dt_max) - math.log(dt_min)) + math.log(dt_min))
        dtv = jnp.maximum(dtv, dt_init_floor)
        b_dt = jnp.log(jnp.expm1(dtv))            # inverse softplus
        alog = jnp.log(jnp.tile(jnp.arange(1, N + 1, dtype=jnp.float32)[:, None],
                                (1, ED)))         # (N, ED): ED on lanes in-kernel
        w_out = u(lk[7], (D, ED), ED)

        per_layer.append({
            'w_in':  w_in.T.astype(jnp.bfloat16),     # (D, 2*ED): [x | z] fused
            'b_in':  b_in[None, :],                   # (1, 2*ED) f32
            'wconv': w_conv.T,                        # (K, ED) f32
            'bconv': b_conv[None, :],                 # (1, ED) f32
            'w_x':   w_x.T.astype(jnp.bfloat16),      # (ED, R+2N): [dr | B | C] fused
            'w_dt':  w_dt.T.astype(jnp.bfloat16),     # (R, ED)
            'b_dt':  b_dt[None, :],                   # (1, ED) f32
            'alog':  alog,                            # (N, ED) f32
            'dpar':  jnp.ones((1, ED), jnp.float32),
            'w_out': w_out.T.astype(jnp.bfloat16),    # (ED, D)
        })

    params = {
        'embedding': emb,
        'wnorm': jnp.ones((1, D), jnp.float32),
        'wnorm_f': jnp.ones((1, D), jnp.float32),
        'wlm_t': wlm.T.astype(jnp.bfloat16),          # (D, V)
    }
    for name in per_layer[0]:
        params[name] = jnp.stack([lyr[name] for lyr in per_layer], axis=0)
    return params


# ----------------------------- pure-JAX reference ----------------------------

def _rmsnorm_ref(x, w, eps=1e-5):
    return x * jax.lax.rsqrt(jnp.mean(x * x, -1, keepdims=True) + eps) * w


def _bdot(a, b):
    # bf16 inputs, f32 accumulation: mirrors the kernel's MXU usage.
    return jnp.dot(a.astype(jnp.bfloat16), b, preferred_element_type=jnp.float32)


def mamba_forward_ref(tokens, params):
    x = jnp.take(params['embedding'], tokens, axis=0).astype(jnp.float32)
    Bsz, L, _ = x.shape
    nl, K, ED = params['wconv'].shape
    N = params['alog'].shape[1]
    R = params['w_dt'].shape[1]
    for li in range(nl):
        xn = _rmsnorm_ref(x, params['wnorm'])
        xz = _bdot(xn, params['w_in'][li]) + params['b_in'][li]
        xp, z = xz[..., :ED], xz[..., ED:]
        xpad = jnp.pad(xp, ((0, 0), (K - 1, 0), (0, 0)))
        acc = jnp.zeros_like(xp) + params['bconv'][li]
        for k in range(K):
            acc = acc + params['wconv'][li][k][None, None, :] * xpad[:, k:k + L, :]
        xs = _silu(acc)
        dbc = _bdot(xs, params['w_x'][li])
        dr, Bm, Cm = dbc[..., :R], dbc[..., R:R + N], dbc[..., R + N:]
        delta = _softplus(_bdot(dr, params['w_dt'][li]) + params['b_dt'][li])
        A_neg = -jnp.exp(params['alog'][li])                       # (N, ED)
        dx = delta * xs
        dA = jnp.exp(delta[:, :, None, :] * A_neg[None, None, :, :])   # (B,L,N,ED)
        bx = dx[:, :, None, :] * Bm[..., None]                         # (B,L,N,ED)

        def step(h, inp):
            dA_t, bx_t, C_t = inp                                   # (B,N,ED)x2,(B,N)
            h = dA_t * h + bx_t
            y_t = jnp.sum(C_t[..., None] * h, axis=1)               # (B, ED)
            return h, y_t

        h0 = jnp.zeros((Bsz, N, ED), jnp.float32)
        _, ys = jax.lax.scan(step, h0,
                             (jnp.swapaxes(dA, 0, 1), jnp.swapaxes(bx, 0, 1),
                              jnp.swapaxes(Cm, 0, 1)))
        y = jnp.swapaxes(ys, 0, 1) + params['dpar'][li] * xs
        x = x + _bdot(y * _silu(z), params['w_out'][li])
    xf = _rmsnorm_ref(x, params['wnorm_f'])
    return _bdot(xf, params['wlm_t'])


# ------------------------------------ main ------------------------------------

if __name__ == "__main__":
    # Mamba config: d_model=32, expand=2 (ED=64), kernel_size=4, dt_rank='auto'=2,
    # d_state=4, conv_bias=True, bias=False, n_layers=2, vocab_size=64.
    D, expand, K, R, N, V, n_layers = 32, 2, 4, 2, 4, 64, 2
    Bsz, L = 2, 8

    key = jax.random.PRNGKey(0)
    kp, kt = jax.random.split(key)
    params = init_params(kp, D=D, expand=expand, K=K, dt_rank=R, N=N, V=V,
                         n_layers=n_layers)
    tokens = jax.random.randint(kt, (Bsz, L), 0, V)

    ref = mamba_forward_ref(tokens, params)

    # Batch folded into the matmul M dim (v5e/v6e layout).
    out_f = jax.block_until_ready(mamba_forward(tokens, params, fold_batch=True))
    assert out_f.shape == (Bsz, L, V), out_f.shape
    err_f = float(jnp.max(jnp.abs(out_f - ref)))
    assert err_f < 5e-3, f"fold_batch=True max abs err vs reference: {err_f}"

    # Batch as a parallel grid axis (v7x layout).
    out_p = jax.block_until_ready(mamba_forward(tokens, params, fold_batch=False))
    assert out_p.shape == (Bsz, L, V), out_p.shape
    err_p = float(jnp.max(jnp.abs(out_p - ref)))
    assert err_p < 5e-3, f"fold_batch=False max abs err vs reference: {err_p}"

    print("KERNEL_OK")
</pallas_src>

<mosaic_0001>
module attributes {stable_mosaic.version = 11 : i64} {
  func.func @mamba_fused_kernel(%arg0: i32, %arg1: memref<16x32xf32, #tpu.memory_space<vmem>>, %arg2: memref<1x32xf32, #tpu.memory_space<vmem>>, %arg3: memref<1x32xf32, #tpu.memory_space<vmem>>, %arg4: memref<32x128xbf16, #tpu.memory_space<vmem>>, %arg5: memref<1x32x128xbf16, #tpu.memory_space<vmem>>, %arg6: memref<1x1x128xf32, #tpu.memory_space<vmem>>, %arg7: memref<1x4x64xf32, #tpu.memory_space<vmem>>, %arg8: memref<1x1x64xf32, #tpu.memory_space<vmem>>, %arg9: memref<1x64x10xbf16, #tpu.memory_space<vmem>>, %arg10: memref<1x2x64xbf16, #tpu.memory_space<vmem>>, %arg11: memref<1x1x64xf32, #tpu.memory_space<vmem>>, %arg12: memref<1x4x64xf32, #tpu.memory_space<vmem>>, %arg13: memref<1x1x64xf32, #tpu.memory_space<vmem>>, %arg14: memref<1x64x32xbf16, #tpu.memory_space<vmem>>, %arg15: memref<16x128xf32, #tpu.memory_space<vmem>>, %arg16: memref<16x32xf32, #tpu.memory_space<vmem>>) attributes {dimension_semantics = [#tpu.dimension_semantics<arbitrary>], iteration_bounds = array<i64: 2>, scalar_prefetch = 0 : i64, scratch_operands = 1 : i64, tpu.core_type = #tpu.core_type<tc>, window_params = [{pipeline_mode = #tpu.pipeline_mode<synchronous>, transform_indices = @transform_0, window_bounds = array<i64: 16, 32>}, {pipeline_mode = #tpu.pipeline_mode<synchronous>, transform_indices = @transform_1, window_bounds = array<i64: 1, 32>}, {pipeline_mode = #tpu.pipeline_mode<synchronous>, transform_indices = @transform_2, window_bounds = array<i64: 1, 32>}, {pipeline_mode = #tpu.pipeline_mode<synchronous>, transform_indices = @transform_3, window_bounds = array<i64: 32, 128>}, {transform_indices = @transform_4, window_bounds = array<i64: 1, 32, 128>}, {transform_indices = @transform_5, window_bounds = array<i64: 1, 1, 128>}, {transform_indices = @transform_6, window_bounds = array<i64: 1, 4, 64>}, {transform_indices = @transform_7, window_bounds = array<i64: 1, 1, 64>}, {transform_indices = @transform_8, window_bounds = array<i64: 1, 64, 10>}, {transform_indices = @transform_9, window_bounds = array<i64: 1, 2, 64>}, {transform_indices = @transform_10, window_bounds = array<i64: 1, 1, 64>}, {transform_indices = @transform_11, window_bounds = array<i64: 1, 4, 64>}, {transform_indices = @transform_12, window_bounds = array<i64: 1, 1, 64>}, {transform_indices = @transform_13, window_bounds = array<i64: 1, 64, 32>}, {pipeline_mode = #tpu.pipeline_mode<synchronous>, transform_indices = @transform_14, window_bounds = array<i64: 16, 128>}]} {
    %c0_i32 = arith.constant 0 : i32
    %0 = arith.cmpi eq, %arg0, %c0_i32 : i32
    %1 = arith.extui %0 : i1 to i32
    %c0_i32_0 = arith.constant 0 : i32
    %2 = arith.cmpi ne, %1, %c0_i32_0 : i32
    scf.if %2 {
      %c0_68 = arith.constant 0 : index
      %c0_69 = arith.constant 0 : index
      %436 = vector.load %arg1[%c0_68, %c0_69] : memref<16x32xf32, #tpu.memory_space<vmem>>, vector<16x32xf32>
      %c0_70 = arith.constant 0 : index
      %c0_71 = arith.constant 0 : index
      %437 = vector.load %arg16[%c0_70, %c0_71] : memref<16x32xf32, #tpu.memory_space<vmem>>, vector<16x32xf32>
      tpu.vector_store %arg16[%c0_70, %c0_71], %436 {strides = array<i32>} : memref<16x32xf32, #tpu.memory_space<vmem>>, vector<16x32xf32>,
      %cst_72 = arith.constant 0.000000e+00 : f32
      %438 = vector.broadcast %cst_72 : f32 to vector<16x128xf32>
      %c0_73 = arith.constant 0 : index
      %c0_74 = arith.constant 0 : index
      %439 = vector.load %arg15[%c0_73, %c0_74] : memref<16x128xf32, #tpu.memory_space<vmem>>, vector<16x128xf32>
      tpu.vector_store %arg15[%c0_73, %c0_74], %438 {strides = array<i32>} : memref<16x128xf32, #tpu.memory_space<vmem>>, vector<16x128xf32>,
    } else {
    }
    %c0 = arith.constant 0 : index
    %c0_1 = arith.constant 0 : index
    %3 = vector.load %arg16[%c0, %c0_1] : memref<16x32xf32, #tpu.memory_space<vmem>>, vector<16x32xf32>
    %4 = arith.mulf %3, %3 : vector<16x32xf32>
    %cst = arith.constant dense<0.000000e+00> : vector<16xf32>
    %5 = vector.multi_reduction <add>, %4, %cst [1] : vector<16x32xf32> to vector<16xf32>
    %6 = vector.shape_cast %5 : vector<16xf32> to vector<16x1xf32>
    %cst_2 = arith.constant 3.200000e+01 : f32
    %7 = vector.broadcast %cst_2 : f32 to vector<16x1xf32>
    %8 = arith.divf %6, %7 : vector<16x1xf32>
    %cst_3 = arith.constant 9.99999974E-6 : f32
    %9 = vector.broadcast %cst_3 : f32 to vector<16x1xf32>
    %10 = arith.addf %8, %9 : vector<16x1xf32>
    %11 = math.rsqrt %10 : vector<16x1xf32>
    %12 = vector.broadcast %11 : vector<16x1xf32> to vector<16x32xf32>
    %13 = arith.mulf %3, %12 : vector<16x32xf32>
    %c0_4 = arith.constant 0 : index
    %c0_5 = arith.constant 0 : index
    %14 = vector.load %arg2[%c0_4, %c0_5] : memref<1x32xf32, #tpu.memory_space<vmem>>, vector<1x32xf32>
    %15 = vector.broadcast %14 : vector<1x32xf32> to vector<16x32xf32>
    %16 = arith.mulf %13, %15 : vector<16x32xf32>
    %17 = arith.truncf %16 : vector<16x32xf32> to vector<16x32xbf16>
    %c0_6 = arith.constant 0 : index
    %c0_7 = arith.constant 0 : index
    %c0_8 = arith.constant 0 : index
    %18 = vector.load %arg5[%c0_6, %c0_7, %c0_8] : memref<1x32x128xbf16, #tpu.memory_space<vmem>>, vector<1x32x128xbf16>
    %19 = vector.shape_cast %18 : vector<1x32x128xbf16> to vector<32x128xbf16>
    %cst_9 = arith.constant dense<0.000000e+00> : vector<16x128xf32>
    %20 = tpu.matmul %17, %19, %cst_9 {dimension_numbers = #tpu.dot_dimension_numbers<[1], [0], [0], [1], [0, 0, 1, 1], [], []>} : vector<16x32xbf16>, vector<32x128xbf16>, vector<16x128xf32> -> vector<16x128xf32>
    %c0_10 = arith.constant 0 : index
    %c0_11 = arith.constant 0 : index
    %c0_12 = arith.constant 0 : index
    %21 = vector.load %arg6[%c0_10, %c0_11, %c0_12] : memref<1x1x128xf32, #tpu.memory_space<vmem>>, vector<1x1x128xf32>
    %22 = vector.shape_cast %21 : vector<1x1x128xf32> to vector<1x128xf32>
    %23 = vector.broadcast %22 : vector<1x128xf32> to vector<16x128xf32>
    %24 = arith.addf %20, %23 : vector<16x128xf32>
    %25 = vector.extract_strided_slice %24 {offsets = [0, 0], sizes = [16, 64], strides = [1, 1]} : vector<16x128xf32> to vector<16x64xf32>
    %26 = vector.extract_strided_slice %24 {offsets = [0, 64], sizes = [16, 64], strides = [1, 1]} : vector<16x128xf32> to vector<16x64xf32>
    %c0_13 = arith.constant 0 : index
    %c0_14 = arith.constant 0 : index
    %c0_15 = arith.constant 0 : index
    %27 = vector.load %arg7[%c0_13, %c0_14, %c0_15] : memref<1x4x64xf32, #tpu.memory_space<vmem>>, vector<1x4x64xf32>
    %28 = vector.shape_cast %27 : vector<1x4x64xf32> to vector<4x64xf32>
    %29 = tpu.iota {dimensions = array<i32: 1>} : vector<2x8x64xi32>
    %30 = vector.shape_cast %29 : vector<2x8x64xi32> to vector<16x64xi32>
    %31 = vector.extract_strided_slice %28 {offsets = [3, 0], sizes = [1, 64], strides = [1, 1]} : vector<4x64xf32> to vector<1x64xf32>
    %32 = vector.broadcast %31 : vector<1x64xf32> to vector<16x64xf32>
    %33 = arith.mulf %32, %25 : vector<16x64xf32>
    %c0_16 = arith.constant 0 : index
    %c0_17 = arith.constant 0 : index
    %c0_18 = arith.constant 0 : index
    %34 = vector.load %arg8[%c0_16, %c0_17, %c0_18] : memref<1x1x64xf32, #tpu.memory_space<vmem>>, vector<1x1x64xf32>
    %35 = vector.shape_cast %34 : vector<1x1x64xf32> to vector<1x64xf32>
    %36 = vector.broadcast %35 : vector<1x64xf32> to vector<16x64xf32>
    %37 = arith.addf %33, %36 : vector<16x64xf32>
    %c3_i32 = arith.constant 3 : i32
    %38 = tpu.dynamic_rotate %25 by %c3_i32 dim 0 : vector<16x64xf32>, i32 -> vector<16x64xf32>
    %c3_i32_19 = arith.constant 3 : i32
    %39 = vector.broadcast %c3_i32_19 : i32 to vector<16x64xi32>
    %40 = arith.cmpi sge, %30, %39 : vector<16x64xi32>
    %cst_20 = arith.constant 0.000000e+00 : f32
    %41 = vector.broadcast %cst_20 : f32 to vector<16x64xf32>
    %42 = arith.select %40, %38, %41 : vector<16x64xi1>, vector<16x64xf32>
    %43 = vector.extract_strided_slice %28 {offsets = [0, 0], sizes = [1, 64], strides = [1, 1]} : vector<4x64xf32> to vector<1x64xf32>
    %44 = vector.broadcast %43 : vector<1x64xf32> to vector<16x64xf32>
    %45 = arith.mulf %44, %42 : vector<16x64xf32>
    %46 = arith.addf %37, %45 : vector<16x64xf32>
    %c2_i32 = arith.constant 2 : i32
    %47 = tpu.dynamic_rotate %25 by %c2_i32 dim 0 : vector<16x64xf32>, i32 -> vector<16x64xf32>
    %c2_i32_21 = arith.constant 2 : i32
    %48 = vector.broadcast %c2_i32_21 : i32 to vector<16x64xi32>
    %49 = arith.cmpi sge, %30, %48 : vector<16x64xi32>
    %cst_22 = arith.constant 0.000000e+00 : f32
    %50 = vector.broadcast %cst_22 : f32 to vector<16x64xf32>
    %51 = arith.select %49, %47, %50 : vector<16x64xi1>, vector<16x64xf32>
    %52 = vector.extract_strided_slice %28 {offsets = [1, 0], sizes = [1, 64], strides = [1, 1]} : vector<4x64xf32> to vector<1x64xf32>
    %53 = vector.broadcast %52 : vector<1x64xf32> to vector<16x64xf32>
    %54 = arith.mulf %53, %51 : vector<16x64xf32>
    %55 = arith.addf %46, %54 : vector<16x64xf32>
    %c1_i32 = arith.constant 1 : i32
    %56 = tpu.dynamic_rotate %25 by %c1_i32 dim 0 : vector<16x64xf32>, i32 -> vector<16x64xf32>
    %c1_i32_23 = arith.constant 1 : i32
    %57 = vector.broadcast %c1_i32_23 : i32 to vector<16x64xi32>
    %58 = arith.cmpi sge, %30, %57 : vector<16x64xi32>
    %cst_24 = arith.constant 0.000000e+00 : f32
    %59 = vector.broadcast %cst_24 : f32 to vector<16x64xf32>
    %60 = arith.select %58, %56, %59 : vector<16x64xi1>, vector<16x64xf32>
    %61 = vector.extract_strided_slice %28 {offsets = [2, 0], sizes = [1, 64], strides = [1, 1]} : vector<4x64xf32> to vector<1x64xf32>
    %62 = vector.broadcast %61 : vector<1x64xf32> to vector<16x64xf32>
    %63 = arith.mulf %62, %60 : vector<16x64xf32>
    %64 = arith.addf %55, %63 : vector<16x64xf32>
    %cst_25 = arith.constant 5.000000e-01 : f32
    %65 = vector.broadcast %cst_25 : f32 to vector<16x64xf32>
    %66 = arith.mulf %65, %64 : vector<16x64xf32>
    %67 = math.tanh %66 : vector<16x64xf32>
    %cst_26 = arith.constant 1.000000e+00 : f32
    %68 = vector.broadcast %cst_26 : f32 to vector<16x64xf32>
    %69 = arith.addf %67, %68 : vector<16x64xf32>
    %cst_27 = arith.constant 5.000000e-01 : f32
    %70 = vector.broadcast %cst_27 : f32 to vector<16x64xf32>
    %71 = arith.mulf %70, %69 : vector<16x64xf32>
    %72 = arith.mulf %64, %71 : vector<16x64xf32>
    %73 = arith.truncf %72 : vector<16x64xf32> to vector<16x64xbf16>
    %c0_28 = arith.constant 0 : index
    %c0_29 = arith.constant 0 : index
    %c0_30 = arith.constant 0 : index
    %74 = vector.load %arg9[%c0_28, %c0_29, %c0_30] : memref<1x64x10xbf16, #tpu.memory_space<vmem>>, vector<1x64x10xbf16>
    %75 = vector.shape_cast %74 : vector<1x64x10xbf16> to vector<64x10xbf16>
    %cst_31 = arith.constant dense<0.000000e+00> : vector<16x10xf32>
    %76 = tpu.matmul %73, %75, %cst_31 {dimension_numbers = #tpu.dot_dimension_numbers<[1], [0], [0], [1], [0, 0, 1, 1], [], []>} : vector<16x64xbf16>, vector<64x10xbf16>, vector<16x10xf32> -> vector<16x10xf32>
    %77 = vector.extract_strided_slice %76 {offsets = [0, 0], sizes = [16, 2], strides = [1, 1]} : vector<16x10xf32> to vector<16x2xf32>
    %78 = arith.truncf %77 : vector<16x2xf32> to vector<16x2xbf16>
    %79 = vector.extract_strided_slice %76 {offsets = [0, 2], sizes = [16, 4], strides = [1, 1]} : vector<16x10xf32> to vector<16x4xf32>
    %80 = vector.extract_strided_slice %76 {offsets = [0, 6], sizes = [16, 4], strides = [1, 1]} : vector<16x10xf32> to vector<16x4xf32>
    %c0_32 = arith.constant 0 : index
    %c0_33 = arith.constant 0 : index
    %c0_34 = arith.constant 0 : index
    %81 = vector.load %arg10[%c0_32, %c0_33, %c0_34] : memref<1x2x64xbf16, #tpu.memory_space<vmem>>, vector<1x2x64xbf16>
    %82 = vector.shape_cast %81 : vector<1x2x64xbf16> to vector<2x64xbf16>
    %cst_35 = arith.constant dense<0.000000e+00> : vector<16x64xf32>
    %83 = tpu.matmul %78, %82, %cst_35 {dimension_numbers = #tpu.dot_dimension_numbers<[1], [0], [0], [1], [0, 0, 1, 1], [], []>} : vector<16x2xbf16>, vector<2x64xbf16>, vector<16x64xf32> -> vector<16x64xf32>
    %c0_36 = arith.constant 0 : index
    %c0_37 = arith.constant 0 : index
    %c0_38 = arith.constant 0 : index
    %84 = vector.load %arg11[%c0_36, %c0_37, %c0_38] : memref<1x1x64xf32, #tpu.memory_space<vmem>>, vector<1x1x64xf32>
    %85 = vector.shape_cast %84 : vector<1x1x64xf32> to vector<1x64xf32>
    %86 = vector.broadcast %85 : vector<1x64xf32> to vector<16x64xf32>
    %87 = arith.addf %83, %86 : vector<16x64xf32>
    %cst_39 = arith.constant 0.000000e+00 : f32
    %88 = vector.broadcast %cst_39 : f32 to vector<16x64xf32>
    %89 = arith.maximumf %87, %88 : vector<16x64xf32>
    %90 = math.absf %87 : vector<16x64xf32>
    %cst_40 = arith.constant 0.000000e+00 : f32
    %91 = vector.broadcast %cst_40 : f32 to vector<16x64xf32>
    %92 = arith.subf %91, %90 : vector<16x64xf32>
    %93 = math.exp %92 : vector<16x64xf32>
    %cst_41 = arith.constant 1.000000e+00 : f32
    %94 = vector.broadcast %cst_41 : f32 to vector<16x64xf32>
    %95 = arith.addf %94, %93 : vector<16x64xf32>
    %96 = math.log %95 : vector<16x64xf32>
    %97 = arith.addf %89, %96 : vector<16x64xf32>
    %c0_42 = arith.constant 0 : index
    %c0_43 = arith.constant 0 : index
    %c0_44 = arith.constant 0 : index
    %98 = vector.load %arg12[%c0_42, %c0_43, %c0_44] : memref<1x4x64xf32, #tpu.memory_space<vmem>>, vector<1x4x64xf32>
    %99 = vector.shape_cast %98 : vector<1x4x64xf32> to vector<4x64xf32>
    %100 = math.exp %99 : vector<4x64xf32>
    %cst_45 = arith.constant 0.000000e+00 : f32
    %101 = vector.broadcast %cst_45 : f32 to vector<4x64xf32>
    %102 = arith.subf %101, %100 : vector<4x64xf32>
    %103 = arith.mulf %97, %72 : vector<16x64xf32>
    %104 = vector.shape_cast %97 : vector<16x64xf32> to vector<1x16x64xf32>
    %105 = vector.shape_cast %102 : vector<4x64xf32> to vector<4x1x64xf32>
    %106 = vector.broadcast %104 : vector<1x16x64xf32> to vector<4x16x64xf32>
    %107 = vector.broadcast %105 : vector<4x1x64xf32> to vector<4x16x64xf32>
    %108 = arith.mulf %106, %107 : vector<4x16x64xf32>
    %109 = math.exp %108 : vector<4x16x64xf32>
    %c0_46 = arith.constant 0 : index
    %c0_47 = arith.constant 0 : index
    %c0_48 = arith.constant 0 : index
    %110 = vector.load %arg13[%c0_46, %c0_47, %c0_48] : memref<1x1x64xf32, #tpu.memory_space<vmem>>, vector<1x1x64xf32>
    %111 = vector.shape_cast %110 : vector<1x1x64xf32> to vector<1x64xf32>
    %112 = vector.broadcast %111 : vector<1x64xf32> to vector<16x64xf32>
    %113 = arith.mulf %112, %72 : vector<16x64xf32>
    %114 = vector.extract_strided_slice %109 {offsets = [0, 0, 0], sizes = [1, 16, 64], strides = [1, 1, 1]} : vector<4x16x64xf32> to vector<1x16x64xf32>
    %115 = vector.shape_cast %114 : vector<1x16x64xf32> to vector<16x64xf32>
    %116 = vector.extract_strided_slice %79 {offsets = [0, 0], sizes = [16, 1], strides = [1, 1]} : vector<16x4xf32> to vector<16x1xf32>
    %117 = vector.broadcast %116 : vector<16x1xf32> to vector<16x64xf32>
    %118 = arith.mulf %103, %117 : vector<16x64xf32>
    %cst_49 = arith.constant 0.000000e+00 : f32
    %119 = vector.broadcast %cst_49 : f32 to vector<1x64xf32>
    %120 = vector.extract_strided_slice %115 {offsets = [0, 0], sizes = [1, 64], strides = [1, 1]} : vector<16x64xf32> to vector<1x64xf32>
    %121 = arith.mulf %120, %119 : vector<1x64xf32>
    %122 = vector.extract_strided_slice %118 {offsets = [0, 0], sizes = [1, 64], strides = [1, 1]} : vector<16x64xf32> to vector<1x64xf32>
    %123 = arith.addf %121, %122 : vector<1x64xf32>
    %124 = vector.extract_strided_slice %115 {offsets = [1, 0], sizes = [1, 64], strides = [1, 1]} : vector<16x64xf32> to vector<1x64xf32>
    %125 = arith.mulf %124, %123 : vector<1x64xf32>
    %126 = vector.extract_strided_slice %118 {offsets = [1, 0], sizes = [1, 64], strides = [1, 1]} : vector<16x64xf32> to vector<1x64xf32>
    %127 = arith.addf %125, %126 : vector<1x64xf32>
    %128 = vector.extract_strided_slice %115 {offsets = [2, 0], sizes = [1, 64], strides = [1, 1]} : vector<16x64xf32> to vector<1x64xf32>
    %129 = arith.mulf %128, %127 : vector<1x64xf32>
    %130 = vector.extract_strided_slice %118 {offsets = [2, 0], sizes = [1, 64], strides = [1, 1]} : vector<16x64xf32> to vector<1x64xf32>
    %131 = arith.addf %129, %130 : vector<1x64xf32>
    %132 = vector.extract_strided_slice %115 {offsets = [3, 0], sizes = [1, 64], strides = [1, 1]} : vector<16x64xf32> to vector<1x64xf32>
    %133 = arith.mulf %132, %131 : vector<1x64xf32>
    %134 = vector.extract_strided_slice %118 {offsets = [3, 0], sizes = [1, 64], strides = [1, 1]} : vector<16x64xf32> to vector<1x64xf32>
    %135 = arith.addf %133, %134 : vector<1x64xf32>
    %136 = vector.extract_strided_slice %115 {offsets = [4, 0], sizes = [1, 64], strides = [1, 1]} : vector<16x64xf32> to vector<1x64xf32>
    %137 = arith.mulf %136, %135 : vector<1x64xf32>
    %138 = vector.extract_strided_slice %118 {offsets = [4, 0], sizes = [1, 64], strides = [1, 1]} : vector<16x64xf32> to vector<1x64xf32>
    %139 = arith.addf %137, %138 : vector<1x64xf32>
    %140 = vector.extract_strided_slice %115 {offsets = [5, 0], sizes = [1, 64], strides = [1, 1]} : vector<16x64xf32> to vector<1x64xf32>
    %141 = arith.mulf %140, %139 : vector<1x64xf32>
    %142 = vector.extract_strided_slice %118 {offsets = [5, 0], sizes = [1, 64], strides = [1, 1]} : vector<16x64xf32> to vector<1x64xf32>
    %143 = arith.addf %141, %142 : vector<1x64xf32>
    %144 = vector.extract_strided_slice %115 {offsets = [6, 0], sizes = [1, 64], strides = [1, 1]} : vector<16x64xf32> to vector<1x64xf32>
    %145 = arith.mulf %144, %143 : vector<1x64xf32>
    %146 = vector.extract_strided_slice %118 {offsets = [6, 0], sizes = [1, 64], strides = [1, 1]} : vector<16x64xf32> to vector<1x64xf32>
    %147 = arith.addf %145, %146 : vector<1x64xf32>
    %148 = vector.extract_strided_slice %115 {offsets = [7, 0], sizes = [1, 64], strides = [1, 1]} : vector<16x64xf32> to vector<1x64xf32>
    %149 = arith.mulf %148, %147 : vector<1x64xf32>
    %150 = vector.extract_strided_slice %118 {offsets = [7, 0], sizes = [1, 64], strides = [1, 1]} : vector<16x64xf32> to vector<1x64xf32>
    %151 = arith.addf %149, %150 : vector<1x64xf32>
    %cst_50 = arith.constant 0.000000e+00 : f32
    %152 = vector.broadcast %cst_50 : f32 to vector<1x64xf32>
    %153 = vector.extract_strided_slice %115 {offsets = [8, 0], sizes = [1, 64], strides = [1, 1]} : vector<16x64xf32> to vector<1x64xf32>
    %154 = arith.mulf %153, %152 : vector<1x64xf32>
    %155 = vector.extract_strided_slice %118 {offsets = [8, 0], sizes = [1, 64], strides = [1, 1]} : vector<16x64xf32> to vector<1x64xf32>
    %156 = arith.addf %154, %155 : vector<1x64xf32>
    %157 = vector.extract_strided_slice %115 {offsets = [9, 0], sizes = [1, 64], strides = [1, 1]} : vector<16x64xf32> to vector<1x64xf32>
    %158 = arith.mulf %157, %156 : vector<1x64xf32>
    %159 = vector.extract_strided_slice %118 {offsets = [9, 0], sizes = [1, 64], strides = [1, 1]} : vector<16x64xf32> to vector<1x64xf32>
    %160 = arith.addf %158, %159 : vector<1x64xf32>
    %161 = vector.extract_strided_slice %115 {offsets = [10, 0], sizes = [1, 64], strides = [1, 1]} : vector<16x64xf32> to vector<1x64xf32>
    %162 = arith.mulf %161, %160 : vector<1x64xf32>
    %163 = vector.extract_strided_slice %118 {offsets = [10, 0], sizes = [1, 64], strides = [1, 1]} : vector<16x64xf32> to vector<1x64xf32>
    %164 = arith.addf %162, %163 : vector<1x64xf32>
    %165 = vector.extract_strided_slice %115 {offsets = [11, 0], sizes = [1, 64], strides = [1, 1]} : vector<16x64xf32> to vector<1x64xf32>
    %166 = arith.mulf %165, %164 : vector<1x64xf32>
    %167 = vector.extract_strided_slice %118 {offsets = [11, 0], sizes = [1, 64], strides = [1, 1]} : vector<16x64xf32> to vector<1x64xf32>
    %168 = arith.addf %166, %167 : vector<1x64xf32>
    %169 = vector.extract_strided_slice %115 {offsets = [12, 0], sizes = [1, 64], strides = [1, 1]} : vector<16x64xf32> to vector<1x64xf32>
    %170 = arith.mulf %169, %168 : vector<1x64xf32>
    %171 = vector.extract_strided_slice %118 {offsets = [12, 0], sizes = [1, 64], strides = [1, 1]} : vector<16x64xf32> to vector<1x64xf32>
    %172 = arith.addf %170, %171 : vector<1x64xf32>
    %173 = vector.extract_strided_slice %115 {offsets = [13, 0], sizes = [1, 64], strides = [1, 1]} : vector<16x64xf32> to vector<1x64xf32>
    %174 = arith.mulf %173, %172 : vector<1x64xf32>
    %175 = vector.extract_strided_slice %118 {offsets = [13, 0], sizes = [1, 64], strides = [1, 1]} : vector<16x64xf32> to vector<1x64xf32>
    %176 = arith.addf %174, %175 : vector<1x64xf32>
    %177 = vector.extract_strided_slice %115 {offsets = [14, 0], sizes = [1, 64], strides = [1, 1]} : vector<16x64xf32> to vector<1x64xf32>
    %178 = arith.mulf %177, %176 : vector<1x64xf32>
    %179 = vector.extract_strided_slice %118 {offsets = [14, 0], sizes = [1, 64], strides = [1, 1]} : vector<16x64xf32> to vector<1x64xf32>
    %180 = arith.addf %178, %179 : vector<1x64xf32>
    %181 = vector.extract_strided_slice %115 {offsets = [15, 0], sizes = [1, 64], strides = [1, 1]} : vector<16x64xf32> to vector<1x64xf32>
    %182 = arith.mulf %181, %180 : vector<1x64xf32>
    %183 = vector.extract_strided_slice %118 {offsets = [15, 0], sizes = [1, 64], strides = [1, 1]} : vector<16x64xf32> to vector<1x64xf32>
    %184 = arith.addf %182, %183 : vector<1x64xf32>
    %185 = tpu.concatenate %123, %127, %131, %135, %139, %143, %147, %151, %156, %160, %164, %168, %172, %176, %180, %184 in 0 : vector<1x64xf32>, vector<1x64xf32>, vector<1x64xf32>, vector<1x64xf32>, vector<1x64xf32>, vector<1x64xf32>, vector<1x64xf32>, vector<1x64xf32>, vector<1x64xf32>, vector<1x64xf32>, vector<1x64xf32>, vector<1x64xf32>, vector<1x64xf32>, vector<1x64xf32>, vector<1x64xf32>, vector<1x64xf32> -> vector<16x64xf32>
    %186 = vector.extract_strided_slice %80 {offsets = [0, 0], sizes = [16, 1], strides = [1, 1]} : vector<16x4xf32> to vector<16x1xf32>
    %187 = vector.broadcast %186 : vector<16x1xf32> to vector<16x64xf32>
    %188 = arith.mulf %187, %185 : vector<16x64xf32>
    %189 = arith.addf %113, %188 : vector<16x64xf32>
    %190 = vector.extract_strided_slice %109 {offsets = [1, 0, 0], sizes = [1, 16, 64], strides = [1, 1, 1]} : vector<4x16x64xf32> to vector<1x16x64xf32>
    %191 = vector.shape_cast %190 : vector<1x16x64xf32> to vector<16x64xf32>
    %192 = vector.extract_strided_slice %79 {offsets = [0, 1], sizes = [16, 1], strides = [1, 1]} : vector<16x4xf32> to vector<16x1xf32>
    %193 = vector.broadcast %192 : vector<16x1xf32> to vector<16x64xf32>
    %194 = arith.mulf %103, %193 : vector<16x64xf32>
    %cst_51 = arith.constant 0.000000e+00 : f32
    %195 = vector.broadcast %cst_51 : f32 to vector<1x64xf32>
    %196 = vector.extract_strided_slice %191 {offsets = [0, 0], sizes = [1, 64], strides = [1, 1]} : vector<16x64xf32> to vector<1x64xf32>
    %197 = arith.mulf %196, %195 : vector<1x64xf32>
    %198 = vector.extract_strided_slice %194 {offsets = [0, 0], sizes = [1, 64], strides = [1, 1]} : vector<16x64xf32> to vector<1x64xf32>
    %199 = arith.addf %197, %198 : vector<1x64xf32>
    %200 = vector.extract_strided_slice %191 {offsets = [1, 0], sizes = [1, 64], strides = [1, 1]} : vector<16x64xf32> to vector<1x64xf32>
    %201 = arith.mulf %200, %199 : vector<1x64xf32>
    %202 = vector.extract_strided_slice %194 {offsets = [1, 0], sizes = [1, 64], strides = [1, 1]} : vector<16x64xf32> to vector<1x64xf32>
    %203 = arith.addf %201, %202 : vector<1x64xf32>
    %204 = vector.extract_strided_slice %191 {offsets = [2, 0], sizes = [1, 64], strides = [1, 1]} : vector<16x64xf32> to vector<1x64xf32>
    %205 = arith.mulf %204, %203 : vector<1x64xf32>
    %206 = vector.extract_strided_slice %194 {offsets = [2, 0], sizes = [1, 64], strides = [1, 1]} : vector<16x64xf32> to vector<1x64xf32>
    %207 = arith.addf %205, %206 : vector<1x64xf32>
    %208 = vector.extract_strided_slice %191 {offsets = [3, 0], sizes = [1, 64], strides = [1, 1]} : vector<16x64xf32> to vector<1x64xf32>
    %209 = arith.mulf %208, %207 : vector<1x64xf32>
    %210 = vector.extract_strided_slice %194 {offsets = [3, 0], sizes = [1, 64], strides = [1, 1]} : vector<16x64xf32> to vector<1x64xf32>
    %211 = arith.addf %209, %210 : vector<1x64xf32>
    %212 = vector.extract_strided_slice %191 {offsets = [4, 0], sizes = [1, 64], strides = [1, 1]} : vector<16x64xf32> to vector<1x64xf32>
    %213 = arith.mulf %212, %211 : vector<1x64xf32>
    %214 = vector.extract_strided_slice %194 {offsets = [4, 0], sizes = [1, 64], strides = [1, 1]} : vector<16x64xf32> to vector<1x64xf32>
    %215 = arith.addf %213, %214 : vector<1x64xf32>
    %216 = vector.extract_strided_slice %191 {offsets = [5, 0], sizes = [1, 64], strides = [1, 1]} : vector<16x64xf32> to vector<1x64xf32>
    %217 = arith.mulf %216, %215 : vector<1x64xf32>
    %218 = vector.extract_strided_slice %194 {offsets = [5, 0], sizes = [1, 64], strides = [1, 1]} : vector<16x64xf32> to vector<1x64xf32>
    %219 = arith.addf %217, %218 : vector<1x64xf32>
    %220 = vector.extract_strided_slice %191 {offsets = [6, 0], sizes = [1, 64], strides = [1, 1]} : vector<16x64xf32> to vector<1x64xf32>
    %221 = arith.mulf %220, %219 : vector<1x64xf32>
    %222 = vector.extract_strided_slice %194 {offsets = [6, 0], sizes = [1, 64], strides = [1, 1]} : vector<16x64xf32> to vector<1x64xf32>
    %223 = arith.addf %221, %222 : vector<1x64xf32>
    %224 = vector.extract_strided_slice %191 {offsets = [7, 0], sizes = [1, 64], strides = [1, 1]} : vector<16x64xf32> to vector<1x64xf32>
    %225 = arith.mulf %224, %223 : vector<1x64xf32>
    %226 = vector.extract_strided_slice %194 {offsets = [7, 0], sizes = [1, 64], strides = [1, 1]} : vector<16x64xf32> to vector<1x64xf32>
    %227 = arith.addf %225, %226 : vector<1x64xf32>
    %cst_52 = arith.constant 0.000000e+00 : f32
    %228 = vector.broadcast %cst_52 : f32 to vector<1x64xf32>
    %229 = vector.extract_strided_slice %191 {offsets = [8, 0], sizes = [1, 64], strides = [1, 1]} : vector<16x64xf32> to vector<1x64xf32>
    %230 = arith.mulf %229, %228 : vector<1x64xf32>
    %231 = vector.extract_strided_slice %194 {offsets = [8, 0], sizes = [1, 64], strides = [1, 1]} : vector<16x64xf32> to vector<1x64xf32>
    %232 = arith.addf %230, %231 : vector<1x64xf32>
    %233 = vector.extract_strided_slice %191 {offsets = [9, 0], sizes = [1, 64], strides = [1, 1]} : vector<16x64xf32> to vector<1x64xf32>
    %234 = arith.mulf %233, %232 : vector<1x64xf32>
    %235 = vector.extract_strided_slice %194 {offsets = [9, 0], sizes = [1, 64], strides = [1, 1]} : vector<16x64xf32> to vector<1x64xf32>
    %236 = arith.addf %234, %235 : vector<1x64xf32>
    %237 = vector.extract_strided_slice %191 {offsets = [10, 0], sizes = [1, 64], strides = [1, 1]} : vector<16x64xf32> to vector<1x64xf32>
    %238 = arith.mulf %237, %236 : vector<1x64xf32>
    %239 = vector.extract_strided_slice %194 {offsets = [10, 0], sizes = [1, 64], strides = [1, 1]} : vector<16x64xf32> to vector<1x64xf32>
    %240 = arith.addf %238, %239 : vector<1x64xf32>
    %241 = vector.extract_strided_slice %191 {offsets = [11, 0], sizes = [1, 64], strides = [1, 1]} : vector<16x64xf32> to vector<1x64xf32>
    %242 = arith.mulf %241, %240 : vector<1x64xf32>
    %243 = vector.extract_strided_slice %194 {offsets = [11, 0], sizes = [1, 64], strides = [1, 1]} : vector<16x64xf32> to vector<1x64xf32>
    %244 = arith.addf %242, %243 : vector<1x64xf32>
    %245 = vector.extract_strided_slice %191 {offsets = [12, 0], sizes = [1, 64], strides = [1, 1]} : vector<16x64xf32> to vector<1x64xf32>
    %246 = arith.mulf %245, %244 : vector<1x64xf32>
    %247 = vector.extract_strided_slice %194 {offsets = [12, 0], sizes = [1, 64], strides = [1, 1]} : vector<16x64xf32> to vector<1x64xf32>
    %248 = arith.addf %246, %247 : vector<1x64xf32>
    %249 = vector.extract_strided_slice %191 {offsets = [13, 0], sizes = [1, 64], strides = [1, 1]} : vector<16x64xf32> to vector<1x64xf32>
    %250 = arith.mulf %249, %248 : vector<1x64xf32>
    %251 = vector.extract_strided_slice %194 {offsets = [13, 0], sizes = [1, 64], strides = [1, 1]} : vector<16x64xf32> to vector<1x64xf32>
    %252 = arith.addf %250, %251 : vector<1x64xf32>
    %253 = vector.extract_strided_slice %191 {offsets = [14, 0], sizes = [1, 64], strides = [1, 1]} : vector<16x64xf32> to vector<1x64xf32>
    %254 = arith.mulf %253, %252 : vector<1x64xf32>
    %255 = vector.extract_strided_slice %194 {offsets = [14, 0], sizes = [1, 64], strides = [1, 1]} : vector<16x64xf32> to vector<1x64xf32>
    %256 = arith.addf %254, %255 : vector<1x64xf32>
    %257 = vector.extract_strided_slice %191 {offsets = [15, 0], sizes = [1, 64], strides = [1, 1]} : vector<16x64xf32> to vector<1x64xf32>
    %258 = arith.mulf %257, %256 : vector<1x64xf32>
    %259 = vector.extract_strided_slice %194 {offsets = [15, 0], sizes = [1, 64], strides = [1, 1]} : vector<16x64xf32> to vector<1x64xf32>
    %260 = arith.addf %258, %259 : vector<1x64xf32>
    %261 = tpu.concatenate %199, %203, %207, %211, %215, %219, %223, %227, %232, %236, %240, %244, %248, %252, %256, %260 in 0 : vector<1x64xf32>, vector<1x64xf32>, vector<1x64xf32>, vector<1x64xf32>, vector<1x64xf32>, vector<1x64xf32>, vector<1x64xf32>, vector<1x64xf32>, vector<1x64xf32>, vector<1x64xf32>, vector<1x64xf32>, vector<1x64xf32>, vector<1x64xf32>, vector<1x64xf32>, vector<1x64xf32>, vector<1x64xf32> -> vector<16x64xf32>
    %262 = vector.extract_strided_slice %80 {offsets = [0, 1], sizes = [16, 1], strides = [1, 1]} : vector<16x4xf32> to vector<16x1xf32>
    %263 = vector.broadcast %262 : vector<16x1xf32> to vector<16x64xf32>
    %264 = arith.mulf %263, %261 : vector<16x64xf32>
    %265 = arith.addf %189, %264 : vector<16x64xf32>
    %266 = vector.extract_strided_slice %109 {offsets = [2, 0, 0], sizes = [1, 16, 64], strides = [1, 1, 1]} : vector<4x16x64xf32> to vector<1x16x64xf32>
    %267 = vector.shape_cast %266 : vector<1x16x64xf32> to vector<16x64xf32>
    %268 = vector.extract_strided_slice %79 {offsets = [0, 2], sizes = [16, 1], strides = [1, 1]} : vector<16x4xf32> to vector<16x1xf32>
    %269 = vector.broadcast %268 : vector<16x1xf32> to vector<16x64xf32>
    %270 = arith.mulf %103, %269 : vector<16x64xf32>
    %cst_53 = arith.constant 0.000000e+00 : f32
    %271 = vector.broadcast %cst_53 : f32 to vector<1x64xf32>
    %272 = vector.extract_strided_slice %267 {offsets = [0, 0], sizes = [1, 64], strides = [1, 1]} : vector<16x64xf32> to vector<1x64xf32>
    %273 = arith.mulf %272, %271 : vector<1x64xf32>
    %274 = vector.extract_strided_slice %270 {offsets = [0, 0], sizes = [1, 64], strides = [1, 1]} : vector<16x64xf32> to vector<1x64xf32>
    %275 = arith.addf %273, %274 : vector<1x64xf32>
    %276 = vector.extract_strided_slice %267 {offsets = [1, 0], sizes = [1, 64], strides = [1, 1]} : vector<16x64xf32> to vector<1x64xf32>
    %277 = arith.mulf %276, %275 : vector<1x64xf32>
    %278 = vector.extract_strided_slice %270 {offsets = [1, 0], sizes = [1, 64], strides = [1, 1]} : vector<16x64xf32> to vector<1x64xf32>
    %279 = arith.addf %277, %278 : vector<1x64xf32>
    %280 = vector.extract_strided_slice %267 {offsets = [2, 0], sizes = [1, 64], strides = [1, 1]} : vector<16x64xf32> to vector<1x64xf32>
    %281 = arith.mulf %280, %279 : vector<1x64xf32>
    %282 = vector.extract_strided_slice %270 {offsets = [2, 0], sizes = [1, 64], strides = [1, 1]} : vector<16x64xf32> to vector<1x64xf32>
    %283 = arith.addf %281, %282 : vector<1x64xf32>
    %284 = vector.extract_strided_slice %267 {offsets = [3, 0], sizes = [1, 64], strides = [1, 1]} : vector<16x64xf32> to vector<1x64xf32>
    %285 = arith.mulf %284, %283 : vector<1x64xf32>
    %286 = vector.extract_strided_slice %270 {offsets = [3, 0], sizes = [1, 64], strides = [1, 1]} : vector<16x64xf32> to vector<1x64xf32>
    %287 = arith.addf %285, %286 : vector<1x64xf32>
    %288 = vector.extract_strided_slice %267 {offsets = [4, 0], sizes = [1, 64], strides = [1, 1]} : vector<16x64xf32> to vector<1x64xf32>
    %289 = arith.mulf %288, %287 : vector<1x64xf32>
    %290 = vector.extract_strided_slice %270 {offsets = [4, 0], sizes = [1, 64], strides = [1, 1]} : vector<16x64xf32> to vector<1x64xf32>
    %291 = arith.addf %289, %290 : vector<1x64xf32>
    %292 = vector.extract_strided_slice %267 {offsets = [5, 0], sizes = [1, 64], strides = [1, 1]} : vector<16x64xf32> to vector<1x64xf32>
    %293 = arith.mulf %292, %291 : vector<1x64xf32>
    %294 = vector.extract_strided_slice %270 {offsets = [5, 0], sizes = [1, 64], strides = [1, 1]} : vector<16x64xf32> to vector<1x64xf32>
    %295 = arith.addf %293, %294 : vector<1x64xf32>
    %296 = vector.extract_strided_slice %267 {offsets = [6, 0], sizes = [1, 64], strides = [1, 1]} : vector<16x64xf32> to vector<1x64xf32>
    %297 = arith.mulf %296, %295 : vector<1x64xf32>
    %298 = vector.extract_strided_slice %270 {offsets = [6, 0], sizes = [1, 64], strides = [1, 1]} : vector<16x64xf32> to vector<1x64xf32>
    %299 = arith.addf %297, %298 : vector<1x64xf32>
    %300 = vector.extract_strided_slice %267 {offsets = [7, 0], sizes = [1, 64], strides = [1, 1]} : vector<16x64xf32> to vector<1x64xf32>
    %301 = arith.mulf %300, %299 : vector<1x64xf32>
    %302 = vector.extract_strided_slice %270 {offsets = [7, 0], sizes = [1, 64], strides = [1, 1]} : vector<16x64xf32> to vector<1x64xf32>
    %303 = arith.addf %301, %302 : vector<1x64xf32>
    %cst_54 = arith.constant 0.000000e+00 : f32
    %304 = vector.broadcast %cst_54 : f32 to vector<1x64xf32>
    %305 = vector.extract_strided_slice %267 {offsets = [8, 0], sizes = [1, 64], strides = [1, 1]} : vector<16x64xf32> to vector<1x64xf32>
    %306 = arith.mulf %305, %304 : vector<1x64xf32>
    %307 = vector.extract_strided_slice %270 {offsets = [8, 0], sizes = [1, 64], strides = [1, 1]} : vector<16x64xf32> to vector<1x64xf32>
    %308 = arith.addf %306, %307 : vector<1x64xf32>
    %309 = vector.extract_strided_slice %267 {offsets = [9, 0], sizes = [1, 64], strides = [1, 1]} : vector<16x64xf32> to vector<1x64xf32>
    %310 = arith.mulf %309, %308 : vector<1x64xf32>
    %311 = vector.extract_strided_slice %270 {offsets = [9, 0], sizes = [1, 64], strides = [1, 1]} : vector<16x64xf32> to vector<1x64xf32>
    %312 = arith.addf %310, %311 : vector<1x64xf32>
    %313 = vector.extract_strided_slice %267 {offsets = [10, 0], sizes = [1, 64], strides = [1, 1]} : vector<16x64xf32> to vector<1x64xf32>
    %314 = arith.mulf %313, %312 : vector<1x64xf32>
    %315 = vector.extract_strided_slice %270 {offsets = [10, 0], sizes = [1, 64], strides = [1, 1]} : vector<16x64xf32> to vector<1x64xf32>
    %316 = arith.addf %314, %315 : vector<1x64xf32>
    %317 = vector.extract_strided_slice %267 {offsets = [11, 0], sizes = [1, 64], strides = [1, 1]} : vector<16x64xf32> to vector<1x64xf32>
    %318 = arith.mulf %317, %316 : vector<1x64xf32>
    %319 = vector.extract_strided_slice %270 {offsets = [11, 0], sizes = [1, 64], strides = [1, 1]} : vector<16x64xf32> to vector<1x64xf32>
    %320 = arith.addf %318, %319 : vector<1x64xf32>
    %321 = vector.extract_strided_slice %267 {offsets = [12, 0], sizes = [1, 64], strides = [1, 1]} : vector<16x64xf32> to vector<1x64xf32>
    %322 = arith.mulf %321, %320 : vector<1x64xf32>
    %323 = vector.extract_strided_slice %270 {offsets = [12, 0], sizes = [1, 64], strides = [1, 1]} : vector<16x64xf32> to vector<1x64xf32>
    %324 = arith.addf %322, %323 : vector<1x64xf32>
    %325 = vector.extract_strided_slice %267 {offsets = [13, 0], sizes = [1, 64], strides = [1, 1]} : vector<16x64xf32> to vector<1x64xf32>
    %326 = arith.mulf %325, %324 : vector<1x64xf32>
    %327 = vector.extract_strided_slice %270 {offsets = [13, 0], sizes = [1, 64], strides = [1, 1]} : vector<16x64xf32> to vector<1x64xf32>
    %328 = arith.addf %326, %327 : vector<1x64xf32>
    %329 = vector.extract_strided_slice %267 {offsets = [14, 0], sizes = [1, 64], strides = [1, 1]} : vector<16x64xf32> to vector<1x64xf32>
    %330 = arith.mulf %329, %328 : vector<1x64xf32>
    %331 = vector.extract_strided_slice %270 {offsets = [14, 0], sizes = [1, 64], strides = [1, 1]} : vector<16x64xf32> to vector<1x64xf32>
    %332 = arith.addf %330, %331 : vector<1x64xf32>
    %333 = vector.extract_strided_slice %267 {offsets = [15, 0], sizes = [1, 64], strides = [1, 1]} : vector<16x64xf32> to vector<1x64xf32>
    %334 = arith.mulf %333, %332 : vector<1x64xf32>
    %335 = vector.extract_strided_slice %270 {offsets = [15, 0], sizes = [1, 64], strides = [1, 1]} : vector<16x64xf32> to vector<1x64xf32>
    %336 = arith.addf %334, %335 : vector<1x64xf32>
    %337 = tpu.concatenate %275, %279, %283, %287, %291, %295, %299, %303, %308, %312, %316, %320, %324, %328, %332, %336 in 0 : vector<1x64xf32>, vector<1x64xf32>, vector<1x64xf32>, vector<1x64xf32>, vector<1x64xf32>, vector<1x64xf32>, vector<1x64xf32>, vector<1x64xf32>, vector<1x64xf32>, vector<1x64xf32>, vector<1x64xf32>, vector<1x64xf32>, vector<1x64xf32>, vector<1x64xf32>, vector<1x64xf32>, vector<1x64xf32> -> vector<16x64xf32>
    %338 = vector.extract_strided_slice %80 {offsets = [0, 2], sizes = [16, 1], strides = [1, 1]} : vector<16x4xf32> to vector<16x1xf32>
    %339 = vector.broadcast %338 : vector<16x1xf32> to vector<16x64xf32>
    %340 = arith.mulf %339, %337 : vector<16x64xf32>
    %341 = arith.addf %265, %340 : vector<16x64xf32>
    %342 = vector.extract_strided_slice %109 {offsets = [3, 0, 0], sizes = [1, 16, 64], strides = [1, 1, 1]} : vector<4x16x64xf32> to vector<1x16x64xf32>
    %343 = vector.shape_cast %342 : vector<1x16x64xf32> to vector<16x64xf32>
    %344 = vector.extract_strided_slice %79 {offsets = [0, 3], sizes = [16, 1], strides = [1, 1]} : vector<16x4xf32> to vector<16x1xf32>
    %345 = vector.broadcast %344 : vector<16x1xf32> to vector<16x64xf32>
    %346 = arith.mulf %103, %345 : vector<16x64xf32>
    %cst_55 = arith.constant 0.000000e+00 : f32
    %347 = vector.broadcast %cst_55 : f32 to vector<1x64xf32>
    %348 = vector.extract_strided_slice %343 {offsets = [0, 0], sizes = [1, 64], strides = [1, 1]} : vector<16x64xf32> to vector<1x64xf32>
    %349 = arith.mulf %348, %347 : vector<1x64xf32>
    %350 = vector.extract_strided_slice %346 {offsets = [0, 0], sizes = [1, 64], strides = [1, 1]} : vector<16x64xf32> to vector<1x64xf32>
    %351 = arith.addf %349, %350 : vector<1x64xf32>
    %352 = vector.extract_strided_slice %343 {offsets = [1, 0], sizes = [1, 64], strides = [1, 1]} : vector<16x64xf32> to vector<1x64xf32>
    %353 = arith.mulf %352, %351 : vector<1x64xf32>
    %354 = vector.extract_strided_slice %346 {offsets = [1, 0], sizes = [1, 64], strides = [1, 1]} : vector<16x64xf32> to vector<1x64xf32>
    %355 = arith.addf %353, %354 : vector<1x64xf32>
    %356 = vector.extract_strided_slice %343 {offsets = [2, 0], sizes = [1, 64], strides = [1, 1]} : vector<16x64xf32> to vector<1x64xf32>
    %357 = arith.mulf %356, %355 : vector<1x64xf32>
    %358 = vector.extract_strided_slice %346 {offsets = [2, 0], sizes = [1, 64], strides = [1, 1]} : vector<16x64xf32> to vector<1x64xf32>
    %359 = arith.addf %357, %358 : vector<1x64xf32>
    %360 = vector.extract_strided_slice %343 {offsets = [3, 0], sizes = [1, 64], strides = [1, 1]} : vector<16x64xf32> to vector<1x64xf32>
    %361 = arith.mulf %360, %359 : vector<1x64xf32>
    %362 = vector.extract_strided_slice %346 {offsets = [3, 0], sizes = [1, 64], strides = [1, 1]} : vector<16x64xf32> to vector<1x64xf32>
    %363 = arith.addf %361, %362 : vector<1x64xf32>
    %364 = vector.extract_strided_slice %343 {offsets = [4, 0], sizes = [1, 64], strides = [1, 1]} : vector<16x64xf32> to vector<1x64xf32>
    %365 = arith.mulf %364, %363 : vector<1x64xf32>
    %366 = vector.extract_strided_slice %346 {offsets = [4, 0], sizes = [1, 64], strides = [1, 1]} : vector<16x64xf32> to vector<1x64xf32>
    %367 = arith.addf %365, %366 : vector<1x64xf32>
    %368 = vector.extract_strided_slice %343 {offsets = [5, 0], sizes = [1, 64], strides = [1, 1]} : vector<16x64xf32> to vector<1x64xf32>
    %369 = arith.mulf %368, %367 : vector<1x64xf32>
    %370 = vector.extract_strided_slice %346 {offsets = [5, 0], sizes = [1, 64], strides = [1, 1]} : vector<16x64xf32> to vector<1x64xf32>
    %371 = arith.addf %369, %370 : vector<1x64xf32>
    %372 = vector.extract_strided_slice %343 {offsets = [6, 0], sizes = [1, 64], strides = [1, 1]} : vector<16x64xf32> to vector<1x64xf32>
    %373 = arith.mulf %372, %371 : vector<1x64xf32>
    %374 = vector.extract_strided_slice %346 {offsets = [6, 0], sizes = [1, 64], strides = [1, 1]} : vector<16x64xf32> to vector<1x64xf32>
    %375 = arith.addf %373, %374 : vector<1x64xf32>
    %376 = vector.extract_strided_slice %343 {offsets = [7, 0], sizes = [1, 64], strides = [1, 1]} : vector<16x64xf32> to vector<1x64xf32>
    %377 = arith.mulf %376, %375 : vector<1x64xf32>
    %378 = vector.extract_strided_slice %346 {offsets = [7, 0], sizes = [1, 64], strides = [1, 1]} : vector<16x64xf32> to vector<1x64xf32>
    %379 = arith.addf %377, %378 : vector<1x64xf32>
    %cst_56 = arith.constant 0.000000e+00 : f32
    %380 = vector.broadcast %cst_56 : f32 to vector<1x64xf32>
    %381 = vector.extract_strided_slice %343 {offsets = [8, 0], sizes = [1, 64], strides = [1, 1]} : vector<16x64xf32> to vector<1x64xf32>
    %382 = arith.mulf %381, %380 : vector<1x64xf32>
    %383 = vector.extract_strided_slice %346 {offsets = [8, 0], sizes = [1, 64], strides = [1, 1]} : vector<16x64xf32> to vector<1x64xf32>
    %384 = arith.addf %382, %383 : vector<1x64xf32>
    %385 = vector.extract_strided_slice %343 {offsets = [9, 0], sizes = [1, 64], strides = [1, 1]} : vector<16x64xf32> to vector<1x64xf32>
    %386 = arith.mulf %385, %384 : vector<1x64xf32>
    %387 = vector.extract_strided_slice %346 {offsets = [9, 0], sizes = [1, 64], strides = [1, 1]} : vector<16x64xf32> to vector<1x64xf32>
    %388 = arith.addf %386, %387 : vector<1x64xf32>
    %389 = vector.extract_strided_slice %343 {offsets = [10, 0], sizes = [1, 64], strides = [1, 1]} : vector<16x64xf32> to vector<1x64xf32>
    %390 = arith.mulf %389, %388 : vector<1x64xf32>
    %391 = vector.extract_strided_slice %346 {offsets = [10, 0], sizes = [1, 64], strides = [1, 1]} : vector<16x64xf32> to vector<1x64xf32>
    %392 = arith.addf %390, %391 : vector<1x64xf32>
    %393 = vector.extract_strided_slice %343 {offsets = [11, 0], sizes = [1, 64], strides = [1, 1]} : vector<16x64xf32> to vector<1x64xf32>
    %394 = arith.mulf %393, %392 : vector<1x64xf32>
    %395 = vector.extract_strided_slice %346 {offsets = [11, 0], sizes = [1, 64], strides = [1, 1]} : vector<16x64xf32> to vector<1x64xf32>
    %396 = arith.addf %394, %395 : vector<1x64xf32>
    %397 = vector.extract_strided_slice %343 {offsets = [12, 0], sizes = [1, 64], strides = [1, 1]} : vector<16x64xf32> to vector<1x64xf32>
    %398 = arith.mulf %397, %396 : vector<1x64xf32>
    %399 = vector.extract_strided_slice %346 {offsets = [12, 0], sizes = [1, 64], strides = [1, 1]} : vector<16x64xf32> to vector<1x64xf32>
    %400 = arith.addf %398, %399 : vector<1x64xf32>
    %401 = vector.extract_strided_slice %343 {offsets = [13, 0], sizes = [1, 64], strides = [1, 1]} : vector<16x64xf32> to vector<1x64xf32>
    %402 = arith.mulf %401, %400 : vector<1x64xf32>
    %403 = vector.extract_strided_slice %346 {offsets = [13, 0], sizes = [1, 64], strides = [1, 1]} : vector<16x64xf32> to vector<1x64xf32>
    %404 = arith.addf %402, %403 : vector<1x64xf32>
    %405 = vector.extract_strided_slice %343 {offsets = [14, 0], sizes = [1, 64], strides = [1, 1]} : vector<16x64xf32> to vector<1x64xf32>
    %406 = arith.mulf %405, %404 : vector<1x64xf32>
    %407 = vector.extract_strided_slice %346 {offsets = [14, 0], sizes = [1, 64], strides = [1, 1]} : vector<16x64xf32> to vector<1x64xf32>
    %408 = arith.addf %406, %407 : vector<1x64xf32>
    %409 = vector.extract_strided_slice %343 {offsets = [15, 0], sizes = [1, 64], strides = [1, 1]} : vector<16x64xf32> to vector<1x64xf32>
    %410 = arith.mulf %409, %408 : vector<1x64xf32>
    %411 = vector.extract_strided_slice %346 {offsets = [15, 0], sizes = [1, 64], strides = [1, 1]} : vector<16x64xf32> to vector<1x64xf32>
    %412 = arith.addf %410, %411 : vector<1x64xf32>
    %413 = tpu.concatenate %351, %355, %359, %363, %367, %371, %375, %379, %384, %388, %392, %396, %400, %404, %408, %412 in 0 : vector<1x64xf32>, vector<1x64xf32>, vector<1x64xf32>, vector<1x64xf32>, vector<1x64xf32>, vector<1x64xf32>, vector<1x64xf32>, vector<1x64xf32>, vector<1x64xf32>, vector<1x64xf32>, vector<1x64xf32>, vector<1x64xf32>, vector<1x64xf32>, vector<1x64xf32>, vector<1x64xf32>, vector<1x64xf32> -> vector<16x64xf32>
    %414 = vector.extract_strided_slice %80 {offsets = [0, 3], sizes = [16, 1], strides = [1, 1]} : vector<16x4xf32> to vector<16x1xf32>
    %415 = vector.broadcast %414 : vector<16x1xf32> to vector<16x64xf32>
    %416 = arith.mulf %415, %413 : vector<16x64xf32>
    %417 = arith.addf %341, %416 : vector<16x64xf32>
    %cst_57 = arith.constant 5.000000e-01 : f32
    %418 = vector.broadcast %cst_57 : f32 to vector<16x64xf32>
    %419 = arith.mulf %418, %26 : vector<16x64xf32>
    %420 = math.tanh %419 : vector<16x64xf32>
    %cst_58 = arith.constant 1.000000e+00 : f32
    %421 = vector.broadcast %cst_58 : f32 to vector<16x64xf32>
    %422 = arith.addf %420, %421 : vector<16x64xf32>
    %cst_59 = arith.constant 5.000000e-01 : f32
    %423 = vector.broadcast %cst_59 : f32 to vector<16x64xf32>
    %424 = arith.mulf %423, %422 : vector<16x64xf32>
    %425 = arith.mulf %26, %424 : vector<16x64xf32>
    %426 = arith.mulf %417, %425 : vector<16x64xf32>
    %427 = arith.truncf %426 : vector<16x64xf32> to vector<16x64xbf16>
    %c0_60 = arith.constant 0 : index
    %c0_61 = arith.constant 0 : index
    %c0_62 = arith.constant 0 : index
    %428 = vector.load %arg14[%c0_60, %c0_61, %c0_62] : memref<1x64x32xbf16, #tpu.memory_space<vmem>>, vector<1x64x32xbf16>
    %429 = vector.shape_cast %428 : vector<1x64x32xbf16> to vector<64x32xbf16>
    %cst_63 = arith.constant dense<0.000000e+00> : vector<16x32xf32>
    %430 = tpu.matmul %427, %429, %cst_63 {dimension_numbers = #tpu.dot_dimension_numbers<[1], [0], [0], [1], [0, 0, 1, 1], [], []>} : vector<16x64xbf16>, vector<64x32xbf16>, vector<16x32xf32> -> vector<16x32xf32>
    %431 = arith.addf %3, %430 : vector<16x32xf32>
    %c0_64 = arith.constant 0 : index
    %c0_65 = arith.constant 0 : index
    %432 = vector.load %arg16[%c0_64, %c0_65] : memref<16x32xf32, #tpu.memory_space<vmem>>, vector<16x32xf32>
    tpu.vector_store %arg16[%c0_64, %c0_65], %431 {strides = array<i32>} : memref<16x32xf32, #tpu.memory_space<vmem>>, vector<16x32xf32>,
    %c1_i32_66 = arith.constant 1 : i32
    %433 = arith.cmpi eq, %arg0, %c1_i32_66 : i32
    %434 = arith.extui %433 : i1 to i32
    %c0_i32_67 = arith.constant 0 : i32
    %435 = arith.cmpi ne, %434, %c0_i32_67 : i32
    scf.if %435 {
      %436 = arith.mulf %431, %431 : vector<16x32xf32>
      %cst_68 = arith.constant dense<0.000000e+00> : vector<16xf32>
      %437 = vector.multi_reduction <add>, %436, %cst_68 [1] : vector<16x32xf32> to vector<16xf32>
      %438 = vector.shape_cast %437 : vector<16xf32> to vector<16x1xf32>
      %cst_69 = arith.constant 3.200000e+01 : f32
      %439 = vector.broadcast %cst_69 : f32 to vector<16x1xf32>
      %440 = arith.divf %438, %439 : vector<16x1xf32>
      %cst_70 = arith.constant 9.99999974E-6 : f32
      %441 = vector.broadcast %cst_70 : f32 to vector<16x1xf32>
      %442 = arith.addf %440, %441 : vector<16x1xf32>
      %443 = math.rsqrt %442 : vector<16x1xf32>
      %444 = vector.broadcast %443 : vector<16x1xf32> to vector<16x32xf32>
      %445 = arith.mulf %431, %444 : vector<16x32xf32>
      %c0_71 = arith.constant 0 : index
      %c0_72 = arith.constant 0 : index
      %446 = vector.load %arg3[%c0_71, %c0_72] : memref<1x32xf32, #tpu.memory_space<vmem>>, vector<1x32xf32>
      %447 = vector.broadcast %446 : vector<1x32xf32> to vector<16x32xf32>
      %448 = arith.mulf %445, %447 : vector<16x32xf32>
      %449 = arith.truncf %448 : vector<16x32xf32> to vector<16x32xbf16>
      %c0_73 = arith.constant 0 : index
      %c0_74 = arith.constant 0 : index
      %450 = vector.load %arg4[%c0_73, %c0_74] : memref<32x128xbf16, #tpu.memory_space<vmem>>, vector<32x128xbf16>
      %cst_75 = arith.constant dense<0.000000e+00> : vector<16x128xf32>
      %451 = tpu.matmul %449, %450, %cst_75 {dimension_numbers = #tpu.dot_dimension_numbers<[1], [0], [0], [1], [0, 0, 1, 1], [], []>} : vector<16x32xbf16>, vector<32x128xbf16>, vector<16x128xf32> -> vector<16x128xf32>
      %c0_76 = arith.constant 0 : index
      %c0_77 = arith.constant 0 : index
      %452 = vector.load %arg15[%c0_76, %c0_77] : memref<16x128xf32, #tpu.memory_space<vmem>>, vector<16x128xf32>
      tpu.vector_store %arg15[%c0_76, %c0_77], %451 {strides = array<i32>} : memref<16x128xf32, #tpu.memory_space<vmem>>, vector<16x128xf32>,
    } else {
    }
    return
  }
  func.func @transform_0(%arg0: i32) -> (i32, i32) {
    %c0_i32 = arith.constant 0 : i32
    %c0_i32_0 = arith.constant 0 : i32
    %c0_i32_1 = arith.constant 0 : i32
    return %c0_i32, %c0_i32_0 : i32, i32
  }
  func.func @transform_1(%arg0: i32) -> (i32, i32) {
    %c0_i32 = arith.constant 0 : i32
    %c0_i32_0 = arith.constant 0 : i32
    %c0_i32_1 = arith.constant 0 : i32
    return %c0_i32, %c0_i32_0 : i32, i32
  }
  func.func @transform_2(%arg0: i32) -> (i32, i32) {
    %c0_i32 = arith.constant 0 : i32
    %c0_i32_0 = arith.constant 0 : i32
    %c0_i32_1 = arith.constant 0 : i32
    return %c0_i32, %c0_i32_0 : i32, i32
  }
  func.func @transform_3(%arg0: i32) -> (i32, i32) {
    %c0_i32 = arith.constant 0 : i32
    %c0_i32_0 = arith.constant 0 : i32
    %c0_i32_1 = arith.constant 0 : i32
    return %c0_i32, %c0_i32_0 : i32, i32
  }
  func.func @transform_4(%arg0: i32) -> (i32, i32, i32) {
    %c0_i32 = arith.constant 0 : i32
    %c0_i32_0 = arith.constant 0 : i32
    %c0_i32_1 = arith.constant 0 : i32
    return %arg0, %c0_i32, %c0_i32_0 : i32, i32, i32
  }
  func.func @transform_5(%arg0: i32) -> (i32, i32, i32) {
    %c0_i32 = arith.constant 0 : i32
    %c0_i32_0 = arith.constant 0 : i32
    %c0_i32_1 = arith.constant 0 : i32
    return %arg0, %c0_i32, %c0_i32_0 : i32, i32, i32
  }
  func.func @transform_6(%arg0: i32) -> (i32, i32, i32) {
    %c0_i32 = arith.constant 0 : i32
    %c0_i32_0 = arith.constant 0 : i32
    %c0_i32_1 = arith.constant 0 : i32
    return %arg0, %c0_i32, %c0_i32_0 : i32, i32, i32
  }
  func.func @transform_7(%arg0: i32) -> (i32, i32, i32) {
    %c0_i32 = arith.constant 0 : i32
    %c0_i32_0 = arith.constant 0 : i32
    %c0_i32_1 = arith.constant 0 : i32
    return %arg0, %c0_i32, %c0_i32_0 : i32, i32, i32
  }
  func.func @transform_8(%arg0: i32) -> (i32, i32, i32) {
    %c0_i32 = arith.constant 0 : i32
    %c0_i32_0 = arith.constant 0 : i32
    %c0_i32_1 = arith.constant 0 : i32
    return %arg0, %c0_i32, %c0_i32_0 : i32, i32, i32
  }
  func.func @transform_9(%arg0: i32) -> (i32, i32, i32) {
    %c0_i32 = arith.constant 0 : i32
    %c0_i32_0 = arith.constant 0 : i32
    %c0_i32_1 = arith.constant 0 : i32
    return %arg0, %c0_i32, %c0_i32_0 : i32, i32, i32
  }
  func.func @transform_10(%arg0: i32) -> (i32, i32, i32) {
    %c0_i32 = arith.constant 0 : i32
    %c0_i32_0 = arith.constant 0 : i32
    %c0_i32_1 = arith.constant 0 : i32
    return %arg0, %c0_i32, %c0_i32_0 : i32, i32, i32
  }
  func.func @transform_11(%arg0: i32) -> (i32, i32, i32) {
    %c0_i32 = arith.constant 0 : i32
    %c0_i32_0 = arith.constant 0 : i32
    %c0_i32_1 = arith.constant 0 : i32
    return %arg0, %c0_i32, %c0_i32_0 : i32, i32, i32
  }
  func.func @transform_12(%arg0: i32) -> (i32, i32, i32) {
    %c0_i32 = arith.constant 0 : i32
    %c0_i32_0 = arith.constant 0 : i32
    %c0_i32_1 = arith.constant 0 : i32
    return %arg0, %c0_i32, %c0_i32_0 : i32, i32, i32
  }
  func.func @transform_13(%arg0: i32) -> (i32, i32, i32) {
    %c0_i32 = arith.constant 0 : i32
    %c0_i32_0 = arith.constant 0 : i32
    %c0_i32_1 = arith.constant 0 : i32
    return %arg0, %c0_i32, %c0_i32_0 : i32, i32, i32
  }
  func.func @transform_14(%arg0: i32) -> (i32, i32) {
    %c0_i32 = arith.constant 0 : i32
    %c0_i32_0 = arith.constant 0 : i32
    %c0_i32_1 = arith.constant 0 : i32
    return %c0_i32, %c0_i32_0 : i32, i32
  }
}

</mosaic_0001>

<llo_original>
// kernel: tpu_custom_call.1
$region0: #{tpu_custom_call.1}
  #allocation0 [shape = 'u32[]', space=smem, size = 0x4, offset = 0x4, fixed_abs, tag = 'smem constant byte address 0x4 - core index']
  #allocation1 [shape = 'u32[144,128]{1,0:T(1,128)}', space=vmem, size = 0x12000, scoped, tag = 'internal scratch']
  #allocation2 [shape = 'f32[16,32]{1,0:T(8,128)}', space=vmem, size = 0x2000, scoped, tag = 'scratch operand']
  %s0 = inlined_call_operand.vmem [shape: f32[16,32], index: 0, kind: input, shape index: {}]
  %s1 = inlined_call_operand.vmem [shape: f32[1,32], index: 1, kind: input, shape index: {}]
  %s2 = inlined_call_operand.vmem [shape: f32[1,32], index: 2, kind: input, shape index: {}]
  %s3 = inlined_call_operand.vmem [shape: bf16[32,128], index: 3, kind: input, shape index: {}]
  %s4 = inlined_call_operand.vmem [shape: bf16[2,32,128], index: 4, kind: input, shape index: {}]
  %s5 = inlined_call_operand.vmem [shape: f32[2,1,128], index: 5, kind: input, shape index: {}]
  %s6 = inlined_call_operand.vmem [shape: f32[2,4,64], index: 6, kind: input, shape index: {}]
  %s7 = inlined_call_operand.vmem [shape: f32[2,1,64], index: 7, kind: input, shape index: {}]
  %s8 = inlined_call_operand.vmem [shape: bf16[2,64,10], index: 8, kind: input, shape index: {}]
  %s9 = inlined_call_operand.vmem [shape: bf16[2,2,64], index: 9, kind: input, shape index: {}]
  %s10 = inlined_call_operand.vmem [shape: f32[2,1,64], index: 10, kind: input, shape index: {}]
  %s11 = inlined_call_operand.vmem [shape: f32[2,4,64], index: 11, kind: input, shape index: {}]
  %s12 = inlined_call_operand.vmem [shape: f32[2,1,64], index: 12, kind: input, shape index: {}]
  %s13 = inlined_call_operand.vmem [shape: bf16[2,64,32], index: 13, kind: input, shape index: {}]
  %s14 = inlined_call_operand.hbm [shape: f32[16,128], index: 14, kind: output, shape index: {}]
  %s15 = sld [smem:[#allocation0]]
  $region97: #{tpu_custom_call.1} parent=0
    _
  %s17 = ssub.s32 1, %s15
  %s18 = scalar_select 0, %s17, %s15
  $region1: #{tpu_custom_call.1} parent=0
    #allocation3 [shape = 'u8[8192]{0}', space=vmem, size = 0x2000, scoped, tag = 'output window, operand 0, single buffered']
    #allocation4 [shape = 's32[2]{0}', space=sflag, size = 0x8, scoped, tag = 'scoped memory for tpu_custom_call.1']
    %19 = vsyncpa [#allocation4], 0
    loop: start=0, step=1, limit=4
    $region2: #{tpu_custom_call.1} parent=1 // loop_pre_header
      _
    $region3: #{tpu_custom_call.1} parent=1 // loop_header
      %s21 = sphi 0, %s25
      %p22 = scmp.ge.s32.totalorder %s21, 4
      %s29 = sphi 0, %s29
      %s31 = sphi 0, %s29
      %s32 = sphi 0, %s31
      %s46 = sphi 0, %s32
      %s50 = sphi 0, %s50
      %s52 = sphi 0, %s50
      %s53 = sphi 0, %s52
      %s67 = sphi 0, %s53
      %s71 = sphi 0, %s71
      %s73 = sphi 0, %s71
      %s74 = sphi 0, %s73
      %s88 = sphi 0, %s74
      %s92 = sphi 0, %s92
      %s94 = sphi 0, %s92
      %s95 = sphi 0, %s94
      %s109 = sphi 0, %s95
      %s115 = sphi 0, %s117
      %s118 = sphi 0, %s115
      %s119 = sphi 0, %s118
      %s135 = sphi 0, %s119
      %s141 = sphi 0, %s143
      %s144 = sphi 0, %s141
      %s145 = sphi 0, %s144
      %s161 = sphi 0, %s145
      %s167 = sphi 0, %s169
      %s170 = sphi 0, %s167
      %s171 = sphi 0, %s170
      %s187 = sphi 0, %s171
      %s193 = sphi 0, %s195
      %s196 = sphi 0, %s193
      %s197 = sphi 0, %s196
      %s213 = sphi 0, %s197
      %s219 = sphi 0, %s221
      %s222 = sphi 0, %s219
      %s223 = sphi 0, %s222
      %s239 = sphi 0, %s223
      %s245 = sphi 0, %s247
      %s248 = sphi 0, %s245
      %s249 = sphi 0, %s248
      %s265 = sphi 0, %s249
      %s271 = sphi 0, %s273
      %s274 = sphi 0, %s271
      %s275 = sphi 0, %s274
      %s291 = sphi 0, %s275
      %s297 = sphi 0, %s299
      %s300 = sphi 0, %s297
      %s301 = sphi 0, %s300
      %s317 = sphi 0, %s301
      %s323 = sphi 0, %s325
      %s326 = sphi 0, %s323
      %s327 = sphi 0, %s326
      %s343 = sphi 0, %s327
      %s349 = sphi 0, %s351
      %s352 = sphi 0, %s349
      %s353 = sphi 0, %s352
      %s369 = sphi 0, %s353
      %s373 = sphi 0, %s373
      %s375 = sphi 0, %s373
      %s376 = sphi 0, %s375
      %s390 = sphi 0, %s376
    $region4: #{tpu_custom_call.1} parent=1 // loop_header_branch
      %24 = sbr.rel (%p22) target = $region8
    $region5: #{tpu_custom_call.1} parent=1 // loop_body
      %s26 = ssub.s32 %s21, 1
      %s27 = ssub.s32 %s21, 2
      %s28 = sadd.s32 %s21, 1
      %s30 = sadd.s32 %s29, 1
      %p33 = scmp.eq.s32.totalorder %s21, 1
      %p34 = scmp.ne.s32.totalorder %s29, %s31
      %p35 = scmp.eq.s32.totalorder %s21, 0
      %p36 = por %p34, %p35
      %p37 = scmp.ne.s32.totalorder %s29, %s31
      %p38 = scmp.eq.s32.totalorder %s26, 1
      %p39 = por %p37, %p38
      %p40 = scmp.ne.s32.totalorder %s31, %s32
      %p41 = scmp.eq.s32.totalorder %s26, 0
      %p42 = por %p40, %p41
      %p43 = scmp.ne.s32.totalorder %s31, %s32
      %p44 = scmp.eq.s32.totalorder %s27, 1
      %p45 = por %p43, %p44
      %p47 = scmp.ne.s32.totalorder %s32, %s46
      %p48 = scmp.eq.s32.totalorder %s27, 0
      %p49 = por %p47, %p48
      %s51 = sadd.s32 %s50, 1
      %p54 = scmp.eq.s32.totalorder %s21, 1
      %p55 = scmp.ne.s32.totalorder %s50, %s52
      %p56 = scmp.eq.s32.totalorder %s21, 0
      %p57 = por %p55, %p56
      %p58 = scmp.ne.s32.totalorder %s50, %s52
      %p59 = scmp.eq.s32.totalorder %s26, 1
      %p60 = por %p58, %p59
      %p61 = scmp.ne.s32.totalorder %s52, %s53
      %p62 = scmp.eq.s32.totalorder %s26, 0
      %p63 = por %p61, %p62
      %p64 = scmp.ne.s32.totalorder %s52, %s53
      %p65 = scmp.eq.s32.totalorder %s27, 1
      %p66 = por %p64, %p65
      %p68 = scmp.ne.s32.totalorder %s53, %s67
      %p69 = scmp.eq.s32.totalorder %s27, 0
      %p70 = por %p68, %p69
      %s72 = sadd.s32 %s71, 1
      %p75 = scmp.eq.s32.totalorder %s21, 1
      %p76 = scmp.ne.s32.totalorder %s71, %s73
      %p77 = scmp.eq.s32.totalorder %s21, 0
      %p78 = por %p76, %p77
      %p79 = scmp.ne.s32.totalorder %s71, %s73
      %p80 = scmp.eq.s32.totalorder %s26, 1
      %p81 = por %p79, %p80
      %p82 = scmp.ne.s32.totalorder %s73, %s74
      %p83 = scmp.eq.s32.totalorder %s26, 0
      %p84 = por %p82, %p83
      %p85 = scmp.ne.s32.totalorder %s73, %s74
      %p86 = scmp.eq.s32.totalorder %s27, 1
      %p87 = por %p85, %p86
      %p89 = scmp.ne.s32.totalorder %s74, %s88
      %p90 = scmp.eq.s32.totalorder %s27, 0
      %p91 = por %p89, %p90
      %s93 = sadd.s32 %s92, 1
      %p96 = scmp.eq.s32.totalorder %s21, 1
      %p97 = scmp.ne.s32.totalorder %s92, %s94
      %p98 = scmp.eq.s32.totalorder %s21, 0
      %p99 = por %p97, %p98
      %p100 = scmp.ne.s32.totalorder %s92, %s94
      %p101 = scmp.eq.s32.totalorder %s26, 1
      %p102 = por %p100, %p101
      %p103 = scmp.ne.s32.totalorder %s94, %s95
      %p104 = scmp.eq.s32.totalorder %s26, 0
      %p105 = por %p103, %p104
      %p106 = scmp.ne.s32.totalorder %s94, %s95
      %p107 = scmp.eq.s32.totalorder %s27, 1
      %p108 = por %p106, %p107
      %p110 = scmp.ne.s32.totalorder %s95, %s109
      %p111 = scmp.eq.s32.totalorder %s27, 0
      %p112 = por %p110, %p111
      %s113 = ssub.s32 %s21, %s28
      %p114 = scmp.eq.s32.totalorder %s113, 0
      %s116 = sadd.s32 %s115, 1
      %s117 = scalar_select %p114, %s115, %s116
      %p120 = pneg %p114
      %p121 = scmp.eq.s32.totalorder %s21, 1
      %p122 = por %p120, %p121
      %p123 = scmp.ne.s32.totalorder %s115, %s118
      %p124 = scmp.eq.s32.totalorder %s21, 0
      %p125 = por %p123, %p124
      %p126 = scmp.ne.s32.totalorder %s115, %s118
      %p127 = scmp.eq.s32.totalorder %s26, 1
      %p128 = por %p126, %p127
      %p129 = scmp.ne.s32.totalorder %s118, %s119
      %p130 = scmp.eq.s32.totalorder %s26, 0
      %p131 = por %p129, %p130
      %p132 = scmp.ne.s32.totalorder %s118, %s119
      %p133 = scmp.eq.s32.totalorder %s27, 1
      %p134 = por %p132, %p133
      %p136 = scmp.ne.s32.totalorder %s119, %s135
      %p137 = scmp.eq.s32.totalorder %s27, 0
      %p138 = por %p136, %p137
      %s139 = ssub.s32 %s21, %s28
      %p140 = scmp.eq.s32.totalorder %s139, 0
      %s142 = sadd.s32 %s141, 1
      %s143 = scalar_select %p140, %s141, %s142
      %p146 = pneg %p140
      %p147 = scmp.eq.s32.totalorder %s21, 1
      %p148 = por %p146, %p147
      %p149 = scmp.ne.s32.totalorder %s141, %s144
      %p150 = scmp.eq.s32.totalorder %s21, 0
      %p151 = por %p149, %p150
      %p152 = scmp.ne.s32.totalorder %s141, %s144
      %p153 = scmp.eq.s32.totalorder %s26, 1
      %p154 = por %p152, %p153
      %p155 = scmp.ne.s32.totalorder %s144, %s145
      %p156 = scmp.eq.s32.totalorder %s26, 0
      %p157 = por %p155, %p156
      %p158 = scmp.ne.s32.totalorder %s144, %s145
      %p159 = scmp.eq.s32.totalorder %s27, 1
      %p160 = por %p158, %p159
      %p162 = scmp.ne.s32.totalorder %s145, %s161
      %p163 = scmp.eq.s32.totalorder %s27, 0
      %p164 = por %p162, %p163
      %s165 = ssub.s32 %s21, %s28
      %p166 = scmp.eq.s32.totalorder %s165, 0
      %s168 = sadd.s32 %s167, 1
      %s169 = scalar_select %p166, %s167, %s168
      %p172 = pneg %p166
      %p173 = scmp.eq.s32.totalorder %s21, 1
      %p174 = por %p172, %p173
      %p175 = scmp.ne.s32.totalorder %s167, %s170
      %p176 = scmp.eq.s32.totalorder %s21, 0
      %p177 = por %p175, %p176
      %p178 = scmp.ne.s32.totalorder %s167, %s170
      %p179 = scmp.eq.s32.totalorder %s26, 1
      %p180 = por %p178, %p179
      %p181 = scmp.ne.s32.totalorder %s170, %s171
      %p182 = scmp.eq.s32.totalorder %s26, 0
      %p183 = por %p181, %p182
      %p184 = scmp.ne.s32.totalorder %s170, %s171
      %p185 = scmp.eq.s32.totalorder %s27, 1
      %p186 = por %p184, %p185
      %p188 = scmp.ne.s32.totalorder %s171, %s187
      %p189 = scmp.eq.s32.totalorder %s27, 0
      %p190 = por %p188, %p189
      %s191 = ssub.s32 %s21, %s28
      %p192 = scmp.eq.s32.totalorder %s191, 0
      %s194 = sadd.s32 %s193, 1
      %s195 = scalar_select %p192, %s193, %s194
      %p198 = pneg %p192
      %p199 = scmp.eq.s32.totalorder %s21, 1
      %p200 = por %p198, %p199
      %p201 = scmp.ne.s32.totalorder %s193, %s196
      %p202 = scmp.eq.s32.totalorder %s21, 0
      %p203 = por %p201, %p202
      %p204 = scmp.ne.s32.totalorder %s193, %s196
      %p205 = scmp.eq.s32.totalorder %s26, 1
      %p206 = por %p204, %p205
      %p207 = scmp.ne.s32.totalorder %s196, %s197
      %p208 = scmp.eq.s32.totalorder %s26, 0
      %p209 = por %p207, %p208
      %p210 = scmp.ne.s32.totalorder %s196, %s197
      %p211 = scmp.eq.s32.totalorder %s27, 1
      %p212 = por %p210, %p211
      %p214 = scmp.ne.s32.totalorder %s197, %s213
      %p215 = scmp.eq.s32.totalorder %s27, 0
      %p216 = por %p214, %p215
      %s217 = ssub.s32 %s21, %s28
      %p218 = scmp.eq.s32.totalorder %s217, 0
      %s220 = sadd.s32 %s219, 1
      %s221 = scalar_select %p218, %s219, %s220
      %p224 = pneg %p218
      %p225 = scmp.eq.s32.totalorder %s21, 1
      %p226 = por %p224, %p225
      %p227 = scmp.ne.s32.totalorder %s219, %s222
      %p228 = scmp.eq.s32.totalorder %s21, 0
      %p229 = por %p227, %p228
      %p230 = scmp.ne.s32.totalorder %s219, %s222
      %p231 = scmp.eq.s32.totalorder %s26, 1
      %p232 = por %p230, %p231
      %p233 = scmp.ne.s32.totalorder %s222, %s223
      %p234 = scmp.eq.s32.totalorder %s26, 0
      %p235 = por %p233, %p234
      %p236 = scmp.ne.s32.totalorder %s222, %s223
      %p237 = scmp.eq.s32.totalorder %s27, 1
      %p238 = por %p236, %p237
      %p240 = scmp.ne.s32.totalorder %s223, %s239
      %p241 = scmp.eq.s32.totalorder %s27, 0
      %p242 = por %p240, %p241
      %s243 = ssub.s32 %s21, %s28
      %p244 = scmp.eq.s32.totalorder %s243, 0
      %s246 = sadd.s32 %s245, 1
      %s247 = scalar_select %p244, %s245, %s246
      %p250 = pneg %p244
      %p251 = scmp.eq.s32.totalorder %s21, 1
      %p252 = por %p250, %p251
      %p253 = scmp.ne.s32.totalorder %s245, %s248
      %p254 = scmp.eq.s32.totalorder %s21, 0
      %p255 = por %p253, %p254
      %p256 = scmp.ne.s32.totalorder %s245, %s248
      %p257 = scmp.eq.s32.totalorder %s26, 1
      %p258 = por %p256, %p257
      %p259 = scmp.ne.s32.totalorder %s248, %s249
      %p260 = scmp.eq.s32.totalorder %s26, 0
      %p261 = por %p259, %p260
      %p262 = scmp.ne.s32.totalorder %s248, %s249
      %p263 = scmp.eq.s32.totalorder %s27, 1
      %p264 = por %p262, %p263
      %p266 = scmp.ne.s32.totalorder %s249, %s265
      %p267 = scmp.eq.s32.totalorder %s27, 0
      %p268 = por %p266, %p267
      %s269 = ssub.s32 %s21, %s28
      %p270 = scmp.eq.s32.totalorder %s269, 0
      %s272 = sadd.s32 %s271, 1
      %s273 = scalar_select %p270, %s271, %s272
      %p276 = pneg %p270
      %p277 = scmp.eq.s32.totalorder %s21, 1
      %p278 = por %p276, %p277
      %p279 = scmp.ne.s32.totalorder %s271, %s274
      %p280 = scmp.eq.s32.totalorder %s21, 0
      %p281 = por %p279, %p280
      %p282 = scmp.ne.s32.totalorder %s271, %s274
      %p283 = scmp.eq.s32.totalorder %s26, 1
      %p284 = por %p282, %p283
      %p285 = scmp.ne.s32.totalorder %s274, %s275
      %p286 = scmp.eq.s32.totalorder %s26, 0
      %p287 = por %p285, %p286
      %p288 = scmp.ne.s32.totalorder %s274, %s275
      %p289 = scmp.eq.s32.totalorder %s27, 1
      %p290 = por %p288, %p289
      %p292 = scmp.ne.s32.totalorder %s275, %s291
      %p293 = scmp.eq.s32.totalorder %s27, 0
      %p294 = por %p292, %p293
      %s295 = ssub.s32 %s21, %s28
      %p296 = scmp.eq.s32.totalorder %s295, 0
      %s298 = sadd.s32 %s297, 1
      %s299 = scalar_select %p296, %s297, %s298
      %p302 = pneg %p296
      %p303 = scmp.eq.s32.totalorder %s21, 1
      %p304 = por %p302, %p303
      %p305 = scmp.ne.s32.totalorder %s297, %s300
      %p306 = scmp.eq.s32.totalorder %s21, 0
      %p307 = por %p305, %p306
      %p308 = scmp.ne.s32.totalorder %s297, %s300
      %p309 = scmp.eq.s32.totalorder %s26, 1
      %p310 = por %p308, %p309
      %p311 = scmp.ne.s32.totalorder %s300, %s301
      %p312 = scmp.eq.s32.totalorder %s26, 0
      %p313 = por %p311, %p312
      %p314 = scmp.ne.s32.totalorder %s300, %s301
      %p315 = scmp.eq.s32.totalorder %s27, 1
      %p316 = por %p314, %p315
      %p318 = scmp.ne.s32.totalorder %s301, %s317
      %p319 = scmp.eq.s32.totalorder %s27, 0
      %p320 = por %p318, %p319
      %s321 = ssub.s32 %s21, %s28
      %p322 = scmp.eq.s32.totalorder %s321, 0
      %s324 = sadd.s32 %s323, 1
      %s325 = scalar_select %p322, %s323, %s324
      %p328 = pneg %p322
      %p329 = scmp.eq.s32.totalorder %s21, 1
      %p330 = por %p328, %p329
      %p331 = scmp.ne.s32.totalorder %s323, %s326
      %p332 = scmp.eq.s32.totalorder %s21, 0
      %p333 = por %p331, %p332
      %p334 = scmp.ne.s32.totalorder %s323, %s326
      %p335 = scmp.eq.s32.totalorder %s26, 1
      %p336 = por %p334, %p335
      %p337 = scmp.ne.s32.totalorder %s326, %s327
      %p338 = scmp.eq.s32.totalorder %s26, 0
      %p339 = por %p337, %p338
      %p340 = scmp.ne.s32.totalorder %s326, %s327
      %p341 = scmp.eq.s32.totalorder %s27, 1
      %p342 = por %p340, %p341
      %p344 = scmp.ne.s32.totalorder %s327, %s343
      %p345 = scmp.eq.s32.totalorder %s27, 0
      %p346 = por %p344, %p345
      %s347 = ssub.s32 %s21, %s28
      %p348 = scmp.eq.s32.totalorder %s347, 0
      %s350 = sadd.s32 %s349, 1
      %s351 = scalar_select %p348, %s349, %s350
      %p354 = pneg %p348
      %p355 = scmp.eq.s32.totalorder %s21, 1
      %p356 = por %p354, %p355
      %p357 = scmp.ne.s32.totalorder %s349, %s352
      %p358 = scmp.eq.s32.totalorder %s21, 0
      %p359 = por %p357, %p358
      %p360 = scmp.ne.s32.totalorder %s349, %s352
      %p361 = scmp.eq.s32.totalorder %s26, 1
      %p362 = por %p360, %p361
      %p363 = scmp.ne.s32.totalorder %s352, %s353
      %p364 = scmp.eq.s32.totalorder %s26, 0
      %p365 = por %p363, %p364
      %p366 = scmp.ne.s32.totalorder %s352, %s353
      %p367 = scmp.eq.s32.totalorder %s27, 1
      %p368 = por %p366, %p367
      %p370 = scmp.ne.s32.totalorder %s353, %s369
      %p371 = scmp.eq.s32.totalorder %s27, 0
      %p372 = por %p370, %p371
      %s374 = sadd.s32 %s373, 1
      %p377 = scmp.eq.s32.totalorder %s21, 1
      %p378 = scmp.ne.s32.totalorder %s373, %s375
      %p379 = scmp.eq.s32.totalorder %s21, 0
      %p380 = por %p378, %p379
      %p381 = scmp.ne.s32.totalorder %s373, %s375
      %p382 = scmp.eq.s32.totalorder %s26, 1
      %p383 = por %p381, %p382
      %p384 = scmp.ne.s32.totalorder %s375, %s376
      %p385 = scmp.eq.s32.totalorder %s26, 0
      %p386 = por %p384, %p385
      %p387 = scmp.ne.s32.totalorder %s375, %s376
      %p388 = scmp.eq.s32.totalorder %s27, 1
      %p389 = por %p387, %p388
      %p391 = scmp.ne.s32.totalorder %s376, %s390
      %p392 = scmp.eq.s32.totalorder %s27, 0
      %p393 = por %p391, %p392
      %p394 = scmp.le.s32.totalorder 1, %s21
      %p395 = scmp.lt.s32.totalorder %s21, 3
      %p396 = pnand %p394, %p395
      %p397 = pneg %p396
      // Predicated region
      $region9: #{tpu_custom_call.1} parent=5 // pred_check
        _
      $region10: #{tpu_custom_call.1} parent=5 // pred_check_branch
        %399 = sbr.rel (%p396) target = $region12
      $region11: #{tpu_custom_call.1} parent=5 // pred_region
        %s400 = ssub.s32 %s21, 1
        // Predicated region
        $region13: #{tpu_custom_call.1} parent=11 // pred_check
          %p401 = pneg %p42
        $region14: #{tpu_custom_call.1} parent=11 // pred_check_branch
          %403 = sbr.rel (%p401) target = $region16
        $region15: #{tpu_custom_call.1} parent=11 // pred_region
          _
        $region16: #{tpu_custom_call.1} parent=11 // pred_fallthru
          _
        // Predicated region
        $region17: #{tpu_custom_call.1} parent=11 // pred_check
          %p404 = pneg %p63
        $region18: #{tpu_custom_call.1} parent=11 // pred_check_branch
          %406 = sbr.rel (%p404) target = $region20
        $region19: #{tpu_custom_call.1} parent=11 // pred_region
          _
        $region20: #{tpu_custom_call.1} parent=11 // pred_fallthru
          _
        // Predicated region
        $region21: #{tpu_custom_call.1} parent=11 // pred_check
          %p407 = pneg %p84
        $region22: #{tpu_custom_call.1} parent=11 // pred_check_branch
          %409 = sbr.rel (%p407) target = $region24
        $region23: #{tpu_custom_call.1} parent=11 // pred_region
          _
        $region24: #{tpu_custom_call.1} parent=11 // pred_fallthru
          _
        // Predicated region
        $region25: #{tpu_custom_call.1} parent=11 // pred_check
          %p410 = pneg %p105
        $region26: #{tpu_custom_call.1} parent=11 // pred_check_branch
          %412 = sbr.rel (%p410) target = $region28
        $region27: #{tpu_custom_call.1} parent=11 // pred_region
          _
        $region28: #{tpu_custom_call.1} parent=11 // pred_fallthru
          _
      $region12: #{tpu_custom_call.1} parent=5 // pred_fallthru
        _
      %p413 = scmp.lt.s32.totalorder %s21, 2
      // Predicated region
      $region29: #{tpu_custom_call.1} parent=5 // pred_check
        %p414 = pneg %p413
      $region30: #{tpu_custom_call.1} parent=5 // pred_check_branch
        %416 = sbr.rel (%p414) target = $region32
      $region31: #{tpu_custom_call.1} parent=5 // pred_region
        // Predicated region
        $region33: #{tpu_custom_call.1} parent=31 // pred_check
          %p417 = pneg %p125
        $region34: #{tpu_custom_call.1} parent=31 // pred_check_branch
          %419 = sbr.rel (%p417) target = $region36
        $region35: #{tpu_custom_call.1} parent=31 // pred_region
          %p420 = scmp.lt.s32.totalorder %s21, 1
          %s421 = scalar_select %p420, %s21, 1
          %s422 = smul.addr %s421, 4
          %s423 = smul.addr %s422, 4
          %s424 = scalar_lea.vmem %s4, %s423
        $region36: #{tpu_custom_call.1} parent=31 // pred_fallthru
          _
        // Predicated region
        $region37: #{tpu_custom_call.1} parent=31 // pred_check
          %p425 = pneg %p151
        $region38: #{tpu_custom_call.1} parent=31 // pred_check_branch
          %427 = sbr.rel (%p425) target = $region40
        $region39: #{tpu_custom_call.1} parent=31 // pred_region
          %p428 = scmp.lt.s32.totalorder %s21, 1
          %s429 = scalar_select %p428, %s21, 1
          %s430 = scalar_lea.vmem %s5, %s429
        $region40: #{tpu_custom_call.1} parent=31 // pred_fallthru
          _
        // Predicated region
        $region41: #{tpu_custom_call.1} parent=31 // pred_check
          %p431 = pneg %p177
        $region42: #{tpu_custom_call.1} parent=31 // pred_check_branch
          %433 = sbr.rel (%p431) target = $region44
        $region43: #{tpu_custom_call.1} parent=31 // pred_region
          %p434 = scmp.lt.s32.totalorder %s21, 1
          %s435 = scalar_select %p434, %s21, 1
          %s436 = smul.addr %s435, 4
          %s437 = scalar_lea.vmem %s6, %s436
        $region44: #{tpu_custom_call.1} parent=31 // pred_fallthru
          _
        // Predicated region
        $region45: #{tpu_custom_call.1} parent=31 // pred_check
          %p438 = pneg %p203
        $region46: #{tpu_custom_call.1} parent=31 // pred_check_branch
          %440 = sbr.rel (%p438) target = $region48
        $region47: #{tpu_custom_call.1} parent=31 // pred_region
          %p441 = scmp.lt.s32.totalorder %s21, 1
          %s442 = scalar_select %p441, %s21, 1
          %s443 = scalar_lea.vmem %s7, %s442
        $region48: #{tpu_custom_call.1} parent=31 // pred_fallthru
          _
        // Predicated region
        $region49: #{tpu_custom_call.1} parent=31 // pred_check
          %p444 = pneg %p229
        $region50: #{tpu_custom_call.1} parent=31 // pred_check_branch
          %446 = sbr.rel (%p444) target = $region52
        $region51: #{tpu_custom_call.1} parent=31 // pred_region
          %p447 = scmp.lt.s32.totalorder %s21, 1
          %s448 = scalar_select %p447, %s21, 1
          %s449 = smul.addr %s448, 8
          %s450 = smul.addr %s449, 4
          %s451 = scalar_lea.vmem %s8, %s450
        $region52: #{tpu_custom_call.1} parent=31 // pred_fallthru
          _
        // Predicated region
        $region53: #{tpu_custom_call.1} parent=31 // pred_check
          %p452 = pneg %p255
        $region54: #{tpu_custom_call.1} parent=31 // pred_check_branch
          %454 = sbr.rel (%p452) target = $region56
        $region55: #{tpu_custom_call.1} parent=31 // pred_region
          %p455 = scmp.lt.s32.totalorder %s21, 1
          %s456 = scalar_select %p455, %s21, 1
          %s457 = scalar_lea.vmem %s9, %s456
        $region56: #{tpu_custom_call.1} parent=31 // pred_fallthru
          _
        // Predicated region
        $region57: #{tpu_custom_call.1} parent=31 // pred_check
          %p458 = pneg %p281
        $region58: #{tpu_custom_call.1} parent=31 // pred_check_branch
          %460 = sbr.rel (%p458) target = $region60
        $region59: #{tpu_custom_call.1} parent=31 // pred_region
          %p461 = scmp.lt.s32.totalorder %s21, 1
          %s462 = scalar_select %p461, %s21, 1
          %s463 = scalar_lea.vmem %s10, %s462
        $region60: #{tpu_custom_call.1} parent=31 // pred_fallthru
          _
        // Predicated region
        $region61: #{tpu_custom_call.1} parent=31 // pred_check
          %p464 = pneg %p307
        $region62: #{tpu_custom_call.1} parent=31 // pred_check_branch
          %466 = sbr.rel (%p464) target = $region64
        $region63: #{tpu_custom_call.1} parent=31 // pred_region
          %p467 = scmp.lt.s32.totalorder %s21, 1
          %s468 = scalar_select %p467, %s21, 1
          %s469 = smul.addr %s468, 4
          %s470 = scalar_lea.vmem %s11, %s469
        $region64: #{tpu_custom_call.1} parent=31 // pred_fallthru
          _
        // Predicated region
        $region65: #{tpu_custom_call.1} parent=31 // pred_check
          %p471 = pneg %p333
        $region66: #{tpu_custom_call.1} parent=31 // pred_check_branch
          %473 = sbr.rel (%p471) target = $region68
        $region67: #{tpu_custom_call.1} parent=31 // pred_region
          %p474 = scmp.lt.s32.totalorder %s21, 1
          %s475 = scalar_select %p474, %s21, 1
          %s476 = scalar_lea.vmem %s12, %s475
        $region68: #{tpu_custom_call.1} parent=31 // pred_fallthru
          _
        // Predicated region
        $region69: #{tpu_custom_call.1} parent=31 // pred_check
          %p477 = pneg %p359
        $region70: #{tpu_custom_call.1} parent=31 // pred_check_branch
          %479 = sbr.rel (%p477) target = $region72
        $region71: #{tpu_custom_call.1} parent=31 // pred_region
          %p480 = scmp.lt.s32.totalorder %s21, 1
          %s481 = scalar_select %p480, %s21, 1
          %s482 = smul.addr %s481, 8
          %s483 = smul.addr %s482, 4
          %s484 = scalar_lea.vmem %s13, %s483
        $region72: #{tpu_custom_call.1} parent=31 // pred_fallthru
          _
      $region32: #{tpu_custom_call.1} parent=5 // pred_fallthru
        _
      %p485 = scmp.le.s32.totalorder 1, %s21
      %p486 = scmp.lt.s32.totalorder %s21, 3
      %p487 = pnand %p485, %p486
      %p488 = pneg %p487
      // Predicated region
      $region73: #{tpu_custom_call.1} parent=5 // pred_check
        _
      $region74: #{tpu_custom_call.1} parent=5 // pred_check_branch
        %490 = sbr.rel (%p487) target = $region76
      $region75: #{tpu_custom_call.1} parent=5 // pred_region
        %s491 = ssub.s32 %s21, 1
        %p492 = pneg %p42
        %p493 = pneg %p39
        %p494 = pneg %p63
        %p495 = pneg %p60
        %p496 = pneg %p84
        %p497 = pneg %p81
        %p498 = pneg %p105
        %p499 = pneg %p102
        %p500 = scmp.lt.s32.totalorder %s26, 1
        %s501 = scalar_select %p500, %s26, 1
        %s502 = smul.addr %s501, 4
        %s503 = smul.addr %s502, 4
        %s504 = scalar_lea.vmem %s4, %s503
        %p505 = pneg %p131
        %p506 = pneg %p128
        %p507 = scmp.lt.s32.totalorder %s26, 1
        %s508 = scalar_select %p507, %s26, 1
        %s509 = scalar_lea.vmem %s5, %s508
        %p510 = pneg %p157
        %p511 = pneg %p154
        %p512 = scmp.lt.s32.totalorder %s26, 1
        %s513 = scalar_select %p512, %s26, 1
        %s514 = smul.addr %s513, 4
        %s515 = scalar_lea.vmem %s6, %s514
        %p516 = pneg %p183
        %p517 = pneg %p180
        %p518 = scmp.lt.s32.totalorder %s26, 1
        %s519 = scalar_select %p518, %s26, 1
        %s520 = scalar_lea.vmem %s7, %s519
        %p521 = pneg %p209
        %p522 = pneg %p206
        %p523 = scmp.lt.s32.totalorder %s26, 1
        %s524 = scalar_select %p523, %s26, 1
        %s525 = smul.addr %s524, 8
        %s526 = smul.addr %s525, 4
        %s527 = scalar_lea.vmem %s8, %s526
        %p528 = pneg %p235
        %p529 = pneg %p232
        %p530 = scmp.lt.s32.totalorder %s26, 1
        %s531 = scalar_select %p530, %s26, 1
        %s532 = scalar_lea.vmem %s9, %s531
        %p533 = pneg %p261
        %p534 = pneg %p258
        %p535 = scmp.lt.s32.totalorder %s26, 1
        %s536 = scalar_select %p535, %s26, 1
        %s537 = scalar_lea.vmem %s10, %s536
        %p538 = pneg %p287
        %p539 = pneg %p284
        %p540 = scmp.lt.s32.totalorder %s26, 1
        %s541 = scalar_select %p540, %s26, 1
        %s542 = smul.addr %s541, 4
        %s543 = scalar_lea.vmem %s11, %s542
        %p544 = pneg %p313
        %p545 = pneg %p310
        %p546 = scmp.lt.s32.totalorder %s26, 1
        %s547 = scalar_select %p546, %s26, 1
        %s548 = scalar_lea.vmem %s12, %s547
        %p549 = pneg %p339
        %p550 = pneg %p336
        %p551 = scmp.lt.s32.totalorder %s26, 1
        %s552 = scalar_select %p551, %s26, 1
        %s553 = smul.addr %s552, 8
        %s554 = smul.addr %s553, 4
        %s555 = scalar_lea.vmem %s13, %s554
        %p556 = pneg %p365
        %p557 = pneg %p362
        %p558 = pneg %p386
        %p559 = pneg %p383
        %p560 = scmp.lt.s32.totalorder %s26, 1
        %s561 = scalar_select %p560, %s26, 1
        %s562 = smul.addr %s561, 4
        %s563 = smul.addr %s562, 4
        %s564 = scalar_lea.vmem %s4, %s563
        %p565 = scmp.lt.s32.totalorder %s26, 1
        %s566 = scalar_select %p565, %s26, 1
        %s567 = scalar_lea.vmem %s5, %s566
        %p568 = scmp.lt.s32.totalorder %s26, 1
        %s569 = scalar_select %p568, %s26, 1
        %s570 = smul.addr %s569, 4
        %s571 = scalar_lea.vmem %s6, %s570
        %p572 = scmp.lt.s32.totalorder %s26, 1
        %s573 = scalar_select %p572, %s26, 1
        %s574 = scalar_lea.vmem %s7, %s573
        %p575 = scmp.lt.s32.totalorder %s26, 1
        %s576 = scalar_select %p575, %s26, 1
        %s577 = smul.addr %s576, 8
        %s578 = smul.addr %s577, 4
        %s579 = scalar_lea.vmem %s8, %s578
        %p580 = scmp.lt.s32.totalorder %s26, 1
        %s581 = scalar_select %p580, %s26, 1
        %s582 = scalar_lea.vmem %s9, %s581
        %p583 = scmp.lt.s32.totalorder %s26, 1
        %s584 = scalar_select %p583, %s26, 1
        %s585 = scalar_lea.vmem %s10, %s584
        %p586 = scmp.lt.s32.totalorder %s26, 1
        %s587 = scalar_select %p586, %s26, 1
        %s588 = smul.addr %s587, 4
        %s589 = scalar_lea.vmem %s11, %s588
        %p590 = scmp.lt.s32.totalorder %s26, 1
        %s591 = scalar_select %p590, %s26, 1
        %s592 = scalar_lea.vmem %s12, %s591
        %p593 = scmp.lt.s32.totalorder %s26, 1
        %s594 = scalar_select %p593, %s26, 1
        %s595 = smul.addr %s594, 8
        %s596 = smul.addr %s595, 4
        %s597 = scalar_lea.vmem %s13, %s596
        %p599 = scmp.eq.s32.totalorder %s26, 0
        // Predicated region
        $region77: #{tpu_custom_call.1} parent=75 // pred_check
          %p600 = pneg %p599
        $region78: #{tpu_custom_call.1} parent=75 // pred_check_branch
          %602 = sbr.rel (%p600) target = $region80
        $region79: #{tpu_custom_call.1} parent=75 // pred_region
          %v603 = vld [vmem:[%s0] sm:$0xff]
          %v604 = vld [vmem:[%s0 + $0x8] sm:$0xff]
          %vm605 = vcmask 261120
          %606 = vst.msk [vmem:[#allocation2] sm:$0xff] %vm605, %v603
          %607 = vst.msk [vmem:[#allocation2 + $0x8] sm:$0xff] %vm605, %v604
          %608 = vst [vmem:[#allocation3] sm:$0xff] 0.0
          %609 = vst [vmem:[#allocation3 + $0x8] sm:$0xff] 0.0
        $region80: #{tpu_custom_call.1} parent=75 // pred_fallthru
          _
        %v610 = vld [vmem:[#allocation2] sm:$0xff]
        %v611 = vld [vmem:[#allocation2 + $0x8] sm:$0xff]
        %v612 = vmul.f32 %v610, %v610
        %v613 = vmul.f32 %v611, %v611
        %vm614 = vcmask 261120
        %v615 = vsel %vm614, %v612, 0.0
        %616 = vadd.xlane.f32.xlu0 %v615
        %v617 = vpop.xlane.xlu0 %616
        %v618 = vsel %vm614, %v613, 0.0
        %619 = vadd.xlane.f32.xlu0 %v618
        %v620 = vpop.xlane.xlu0 %619
        %v621 = vrcp.pop 32.0
        %v622 = vmul.f32 %v617, %v621
        %v623 = vmul.f32 %v620, %v621
        %v624 = vadd.f32 %v622, 1e-05
        %v625 = vadd.f32 %v623, 1e-05
        %v626 = vrsqrt.pop %v624
        %v627 = vrsqrt.pop %v625
        %v628 = vmul.f32 %v610, %v626
        %v629 = vmul.f32 %v611, %v627
        %v630 = vld [vmem:[%s1] sm:$0x1]
        %v632 = vlaneseq
        %v633 = vshrl.u32 %v632, 7
        %v634 = vsub.s32 0, %v633
        %v635 = vrot.slane %v630, %v634
        %v637 = vmul.f32 %v628, %v635
        %v638 = vmul.f32 %v629, %v635
        %v639 = vpack.c.bf16 %v638, %v637
        %v640 = vld [vmem:[%s564] sm:$0xf]
        %v641 = vld [vmem:[%s564 + $0x4] sm:$0xf]
        %v642 = vld [vmem:[%s564 + $0x8] sm:$0xf]
        %v643 = vld [vmem:[%s564 + $0xc] sm:$0xf]
        %v644 = vld [vmem:[%s567] sm:$0x1]
        %v646 = vlaneseq
        %v647 = vshrl.u32 %v646, 7
        %v648 = vsub.s32 0, %v647
        %v649 = vrot.slane %v644, %v648
        %v655 = vunpack.c.l.b16 %v640
        %v656 = vunpack.c.l.b16 %v641
        %v657 = vunpack.c.l.b16 %v642
        %v658 = vunpack.c.l.b16 %v643
        %v659 = vpack.c.b16 %v656, %v655
        %v660 = vpack.c.b16 %v658, %v657
        %v664 = vsel %vm614, %v639, 0
        %666 = vmatprep.subr.bf16.mxu0 0
        %667 = vmatpush1.bf16.msra.mxu0 %v659
        %668 = vmatprep.subr.bf16.mxu0 0
        %669 = vmatpush1.bf16.msra.mxu0 %v660
        %670 = vmatprep.subr.bf16.mxu0 0
        %671 = vmatpush1.bf16.msra.mxu0 0
        %672 = vmatprep.subr.bf16.mxu0 0
        %673 = vmatpush1.bf16.msra.mxu0 0
        %674 = vmatprep.subr.bf16.mxu0 0
        %675 = vmatpush1.bf16.msra.mxu0 0
        %676 = vmatprep.subr.bf16.mxu0 0
        %677 = vmatpush1.bf16.msra.mxu0 0
        %678 = vmatprep.subr.bf16.mxu0 0
        %679 = vmatpush1.bf16.msra.mxu0 0
        %680 = vmatprep.subr.bf16.mxu0 0
        %681 = vmatpush1.bf16.msra.mxu0 0
        %682 = vmatprep.subr.bf16.mxu0 0
        %683 = vmatpush1.bf16.msra.mxu0 0
        %684 = vmatprep.subr.bf16.mxu0 0
        %685 = vmatpush1.bf16.msra.mxu0 0
        %686 = vmatprep.subr.bf16.mxu0 0
        %687 = vmatpush1.bf16.msra.mxu0 0
        %688 = vmatprep.subr.bf16.mxu0 0
        %689 = vmatpush1.bf16.msra.mxu0 0
        %690 = vmatprep.subr.bf16.mxu0 0
        %691 = vmatpush1.bf16.msra.mxu0 0
        %692 = vmatprep.subr.bf16.mxu0 0
        %693 = vmatpush1.bf16.msra.mxu0 0
        %694 = vmatprep.subr.bf16.mxu0 0
        %695 = vmatpush1.bf16.msra.mxu0 0
        %696 = vmatprep.subr.bf16.mxu0 0
        %697 = vmatpush1.bf16.msra.mxu0 0
        %698 = vmatprep.mubr.bf16.mxu0 0
        %699 = vmatmul.mubr.bf16.gmra.mrb[0].mxu0 %v664
        %v700 = vpop.f32.mrb[0].mxu0
        %v701 = vadd.f32 %v649, %v700
        %v702 = vpop.f32.mrb[0].mxu0
        %v703 = vpop.f32.mrb[0].mxu0
        %v704 = vadd.f32 %v649, %v703
        %v705 = vpop.f32.mrb[0].mxu0
        %706 = vdwg.mxu0
        %v707 = vld [vmem:[%s571] sm:$0xf]
        %v708 = vlaneseq
        %v709 = vshrl.u32 %v708, 7
        %v710 = vlaneseq
        %v711 = vshrl.u32 %v710, 7
        %v712 = vsub.s32 3, %v711
        %v713 = vrot.slane %v707, %v712
        %v714 = vmul.f32 %v713, %v701
        %v715 = vmul.f32 %v713, %v704
        %v716 = vld [vmem:[%s574] sm:$0x1]
        %v718 = vlaneseq
        %v719 = vshrl.u32 %v718, 7
        %v720 = vsub.s32 0, %v719
        %v721 = vrot.slane %v716, %v720
        %v723 = vadd.f32 %v714, %v721
        %v724 = vadd.f32 %v715, %v721
        %v725 = vrot.slane %v701, 5
        %v726 = vrot.slane %v704, 5
        %vm727 = vcmp.lt.s32.totalorder %v709, 3
        %v728 = vsel %vm727, %v725, %v726
        %v729 = vsel %vm727, %v726, %v725
        %vm730 = vcmp.ge.s32.totalorder %v709, 3
        %v731 = vsel %vm730, %v729, 0.0
        %v732 = vsel %vm730, %v728, 0.0
        %v733 = vlaneseq
        %v734 = vshrl.u32 %v733, 7
        %v735 = vsub.s32 0, %v734
        %v736 = vrot.slane %v707, %v735
        %v737 = vmul.f32 %v736, %v731
        %v738 = vmul.f32 %v736, %v732
        %v739 = vadd.f32 %v723, %v737
        %v740 = vadd.f32 %v724, %v738
        %v741 = vrot.slane %v701, 6
        %v742 = vrot.slane %v704, 6
        %vm743 = vcmp.lt.s32.totalorder %v709, 2
        %v744 = vsel %vm743, %v741, %v742
        %v745 = vsel %vm743, %v742, %v741
        %vm746 = vcmp.ge.s32.totalorder %v709, 2
        %v747 = vsel %vm746, %v745, 0.0
        %v748 = vsel %vm746, %v744, 0.0
        %v749 = vlaneseq
        %v750 = vshrl.u32 %v749, 7
        %v751 = vsub.s32 1, %v750
        %v752 = vrot.slane %v707, %v751
        %v753 = vmul.f32 %v752, %v747
        %v754 = vmul.f32 %v752, %v748
        %v755 = vadd.f32 %v739, %v753
        %v756 = vadd.f32 %v740, %v754
        %v757 = vrot.slane %v701, 7
        %v758 = vrot.slane %v704, 7
        %vm759 = vcmp.lt.s32.totalorder %v709, 1
        %v760 = vsel %vm759, %v757, %v758
        %v761 = vsel %vm759, %v758, %v757
        %vm762 = vcmp.ge.s32.totalorder %v709, 1
        %v763 = vsel %vm762, %v761, 0.0
        %v764 = vsel %vm762, %v760, 0.0
        %v765 = vlaneseq
        %v766 = vshrl.u32 %v765, 7
        %v767 = vsub.s32 2, %v766
        %v768 = vrot.slane %v707, %v767
        %v769 = vmul.f32 %v768, %v763
        %v770 = vmul.f32 %v768, %v764
        %v771 = vadd.f32 %v755, %v769
        %v772 = vadd.f32 %v756, %v770
        %v773 = vmul.f32 %v771, 0.5
        %v774 = vmul.f32 %v772, 0.5
        %v775 = vtanh.pop %v773
        %v776 = vtanh.pop %v774
        %v777 = vadd.f32 %v775, 1.0
        %v778 = vadd.f32 %v776, 1.0
        %v779 = vmul.f32 %v777, 0.5
        %v780 = vmul.f32 %v778, 0.5
        %v781 = vmul.f32 %v771, %v779
        %v782 = vmul.f32 %v772, %v780
        %v783 = vpack.c.bf16 %v782, %v781
        %v784 = vld [vmem:[%s579] sm:$0xf]
        %v785 = vld [vmem:[%s579 + $0x4] sm:$0xf]
        %v786 = vld [vmem:[%s579 + $0x8] sm:$0xf]
        %v787 = vld [vmem:[%s579 + $0xc] sm:$0xf]
        %v788 = vld [vmem:[%s579 + $0x10] sm:$0xf]
        %v789 = vld [vmem:[%s579 + $0x14] sm:$0xf]
        %v790 = vld [vmem:[%s579 + $0x18] sm:$0xf]
        %v791 = vld [vmem:[%s579 + $0x1c] sm:$0xf]
        %v800 = vunpack.c.l.b16 %v784
        %v801 = vunpack.c.l.b16 %v785
        %v802 = vunpack.c.l.b16 %v786
        %v803 = vunpack.c.l.b16 %v787
        %v804 = vunpack.c.l.b16 %v788
        %v805 = vunpack.c.l.b16 %v789
        %v806 = vunpack.c.l.b16 %v790
        %v807 = vunpack.c.l.b16 %v791
        %v808 = vpack.c.b16 %v801, %v800
        %v809 = vpack.c.b16 %v803, %v802
        %v810 = vpack.c.b16 %v805, %v804
        %v811 = vpack.c.b16 %v807, %v806
        %vm816 = vcmask 523264
        %v818 = vsel %vm816, %v783, 0
        %820 = vmatprep.subr.bf16.mxu0 0
        %821 = vmatpush1.bf16.msra.mxu0 %v808
        %822 = vmatprep.subr.bf16.mxu0 0
        %823 = vmatpush1.bf16.msra.mxu0 %v809
        %824 = vmatprep.subr.bf16.mxu0 0
        %825 = vmatpush1.bf16.msra.mxu0 %v810
        %826 = vmatprep.subr.bf16.mxu0 0
        %827 = vmatpush1.bf16.msra.mxu0 %v811
        %828 = vmatprep.subr.bf16.mxu0 0
        %829 = vmatpush1.bf16.msra.mxu0 0
        %830 = vmatprep.subr.bf16.mxu0 0
        %831 = vmatpush1.bf16.msra.mxu0 0
        %832 = vmatprep.subr.bf16.mxu0 0
        %833 = vmatpush1.bf16.msra.mxu0 0
        %834 = vmatprep.subr.bf16.mxu0 0
        %835 = vmatpush1.bf16.msra.mxu0 0
        %836 = vmatprep.subr.bf16.mxu0 0
        %837 = vmatpush1.bf16.msra.mxu0 0
        %838 = vmatprep.subr.bf16.mxu0 0
        %839 = vmatpush1.bf16.msra.mxu0 0
        %840 = vmatprep.subr.bf16.mxu0 0
        %841 = vmatpush1.bf16.msra.mxu0 0
        %842 = vmatprep.subr.bf16.mxu0 0
        %843 = vmatpush1.bf16.msra.mxu0 0
        %844 = vmatprep.subr.bf16.mxu0 0
        %845 = vmatpush1.bf16.msra.mxu0 0
        %846 = vmatprep.subr.bf16.mxu0 0
        %847 = vmatpush1.bf16.msra.mxu0 0
        %848 = vmatprep.subr.bf16.mxu0 0
        %849 = vmatpush1.bf16.msra.mxu0 0
        %850 = vmatprep.subr.bf16.mxu0 0
        %851 = vmatpush1.bf16.msra.mxu0 0
        %852 = vmatprep.mubr.bf16.mxu0 0
        %853 = vmatmul.mubr.bf16.gmra.mrb[0].mxu0 %v818
        %v854 = vpop.f32.mrb[0].mxu0
        %v855 = vadd.f32 0.0, %v854
        %v856 = vpop.f32.mrb[0].mxu0
        %v857 = vpop.f32.mrb[0].mxu0
        %v858 = vadd.f32 0.0, %v857
        %v859 = vpop.f32.mrb[0].mxu0
        %860 = vdwg.mxu0
        %v861 = vpack.c.bf16 %v858, %v855
        %v862 = vld [vmem:[%s582] sm:$0x1]
        %v863 = vld [vmem:[%s585] sm:$0x1]
        %v865 = vlaneseq
        %v866 = vshrl.u32 %v865, 7
        %v867 = vsub.s32 0, %v866
        %v868 = vrot.slane %v863, %v867
        %vm870 = vcmask 15360
        %v872 = vsel %vm870, %v861, 0
        %vm874 = vcmask 1040384
        %v876 = vsel %vm874, %v862, 0
        %878 = vmatprep.subr.bf16.mxu0 0
        %879 = vmatpush1.bf16.msra.mxu0 %v876
        %880 = vmatprep.subr.bf16.mxu0 0
        %881 = vmatpush1.bf16.msra.mxu0 0
        %882 = vmatprep.subr.bf16.mxu0 0
        %883 = vmatpush1.bf16.msra.mxu0 0
        %884 = vmatprep.subr.bf16.mxu0 0
        %885 = vmatpush1.bf16.msra.mxu0 0
        %886 = vmatprep.subr.bf16.mxu0 0
        %887 = vmatpush1.bf16.msra.mxu0 0
        %888 = vmatprep.subr.bf16.mxu0 0
        %889 = vmatpush1.bf16.msra.mxu0 0
        %890 = vmatprep.subr.bf16.mxu0 0
        %891 = vmatpush1.bf16.msra.mxu0 0
        %892 = vmatprep.subr.bf16.mxu0 0
        %893 = vmatpush1.bf16.msra.mxu0 0
        %894 = vmatprep.subr.bf16.mxu0 0
        %895 = vmatpush1.bf16.msra.mxu0 0
        %896 = vmatprep.subr.bf16.mxu0 0
        %897 = vmatpush1.bf16.msra.mxu0 0
        %898 = vmatprep.subr.bf16.mxu0 0
        %899 = vmatpush1.bf16.msra.mxu0 0
        %900 = vmatprep.subr.bf16.mxu0 0
        %901 = vmatpush1.bf16.msra.mxu0 0
        %902 = vmatprep.subr.bf16.mxu0 0
        %903 = vmatpush1.bf16.msra.mxu0 0
        %904 = vmatprep.subr.bf16.mxu0 0
        %905 = vmatpush1.bf16.msra.mxu0 0
        %906 = vmatprep.subr.bf16.mxu0 0
        %907 = vmatpush1.bf16.msra.mxu0 0
        %908 = vmatprep.subr.bf16.mxu0 0
        %909 = vmatpush1.bf16.msra.mxu0 0
        %910 = vmatprep.mubr.bf16.mxu0 0
        %911 = vmatmul.mubr.bf16.gmra.mrb[0].mxu0 %v872
        %v912 = vpop.f32.mrb[0].mxu0
        %v913 = vadd.f32 %v868, %v912
        %v914 = vpop.f32.mrb[0].mxu0
        %v915 = vpop.f32.mrb[0].mxu0
        %v916 = vadd.f32 %v868, %v915
        %v917 = vpop.f32.mrb[0].mxu0
        %918 = vdwg.mxu0
        %v919 = vmax.f32 %v913, 0.0
        %v920 = vmax.f32 %v916, 0.0
        %v921 = vand.u32 2147483647, %v913
        %v922 = vand.u32 2147483647, %v916
        %v923 = vsub.f32 0.0, %v921
        %v924 = vsub.f32 0.0, %v922
        %v925 = vmul.f32 %v923, 1.442695
        %v926 = vpow.pop %v925
        %v927 = vmul.f32 %v924, 1.442695
        %v928 = vpow.pop %v927
        %v929 = vadd.f32 %v926, 1.0
        %v930 = vadd.f32 %v928, 1.0
        %v931 = vlog2.pop %v929
        %v932 = vmul.f32 %v931, 0.6931472
        %v933 = vlog2.pop %v930
        %v934 = vmul.f32 %v933, 0.6931472
        %v935 = vadd.f32 %v919, %v932
        %v936 = vadd.f32 %v920, %v934
        %v937 = vld [vmem:[%s589] sm:$0xf]
        %v938 = vmul.f32 %v937, 1.442695
        %v939 = vpow.pop %v938
        %v940 = vsub.f32 0.0, %v939
        %v941 = vmul.f32 %v935, %v781
        %v942 = vmul.f32 %v936, %v782
        %v945 = vunpack.c.l.s4 1966171168
        %v946 = vunpack.c.0.s8 %v945
        %v947 = vlaneseq
        %v948 = vshrl.u32 %v947, 7
        %v949 = vsub.s32 %v946, %v948
        %v950 = vrot.slane %v940, %v949
        %v951 = vcombine.high %v950, %v950
        %v953 = vunpack.c.l.s4 1966171168
        %v954 = vunpack.c.0.s8 %v953
        %v955 = vlaneseq
        %v956 = vshrl.u32 %v955, 7
        %v957 = vsub.s32 %v954, %v956
        %v958 = vrot.slane %v950, %v957
        %v960 = vunpack.c.l.s4 1966171168
        %v961 = vunpack.c.0.s8 %v960
        %v962 = vlaneseq
        %v963 = vshrl.u32 %v962, 7
        %v964 = vsub.s32 %v961, %v963
        %v965 = vrot.slane %v951, %v964
        %v966 = vcombine.high %v958, %v958
        %v967 = vcombine.high %v965, %v965
        %v968 = vlaneseq
        %v969 = vshrl.u32 %v968, 7
        %v970 = vsub.s32 0, %v969
        %v971 = vrot.slane %v958, %v970
        %v972 = vlaneseq
        %v973 = vshrl.u32 %v972, 7
        %v974 = vsub.s32 0, %v973
        %v975 = vrot.slane %v965, %v974
        %v976 = vlaneseq
        %v977 = vshrl.u32 %v976, 7
        %v978 = vsub.s32 0, %v977
        %v979 = vrot.slane %v966, %v978
        %v980 = vlaneseq
        %v981 = vshrl.u32 %v980, 7
        %v982 = vsub.s32 0, %v981
        %v983 = vrot.slane %v967, %v982
        %v988 = vmul.f32 %v935, %v971
        %v989 = vmul.f32 %v936, %v971
        %v990 = vmul.f32 %v935, %v975
        %v991 = vmul.f32 %v936, %v975
        %v992 = vmul.f32 %v935, %v979
        %v993 = vmul.f32 %v936, %v979
        %v994 = vmul.f32 %v935, %v983
        %v995 = vmul.f32 %v936, %v983
        %v996 = vmul.f32 %v988, 1.442695
        %v997 = vpow.pop %v996
        %v998 = vmul.f32 %v989, 1.442695
        %v999 = vpow.pop %v998
        %v1000 = vmul.f32 %v990, 1.442695
        %v1001 = vpow.pop %v1000
        %v1002 = vmul.f32 %v991, 1.442695
        %v1003 = vpow.pop %v1002
        %v1004 = vmul.f32 %v992, 1.442695
        %v1005 = vpow.pop %v1004
        %v1006 = vmul.f32 %v993, 1.442695
        %v1007 = vpow.pop %v1006
        %v1008 = vmul.f32 %v994, 1.442695
        %v1009 = vpow.pop %v1008
        %v1010 = vmul.f32 %v995, 1.442695
        %v1011 = vpow.pop %v1010
        %v1012 = vld [vmem:[%s592] sm:$0x1]
        %v1014 = vlaneseq
        %v1015 = vshrl.u32 %v1014, 7
        %v1016 = vsub.s32 0, %v1015
        %v1017 = vrot.slane %v1012, %v1016
        %v1019 = vmul.f32 %v1017, %v781
        %v1020 = vmul.f32 %v1017, %v782
        %1022 = vset.pattern.permute.xlu0 2
        %1023 = vperm.xlu0 %1022, %v855
        %v1024 = vpop.permute.xlu0 %1023
        %1027 = vset.pattern.permute.xlu0 2
        %1028 = vperm.xlu0 %1027, %v858
        %v1029 = vpop.permute.xlu0 %1028
        %v1031 = vmul.f32 %v941, %v1024
        %v1032 = vmul.f32 %v942, %v1029
        %v1033 = vmul.f32 %v997, 0.0
        %v1034 = vadd.f32 %v1033, %v1031
        %v1036 = vrot.slane %v1034, 7
        %v1038 = vmul.f32 %v997, %v1036
        %v1039 = vadd.f32 %v1038, %v1031
        %v1041 = vrot.slane %v1039, 7
        %v1043 = vmul.f32 %v997, %v1041
        %v1044 = vadd.f32 %v1043, %v1031
        %v1046 = vrot.slane %v1044, 7
        %v1048 = vmul.f32 %v997, %v1046
        %v1049 = vadd.f32 %v1048, %v1031
        %v1051 = vrot.slane %v1049, 7
        %v1053 = vmul.f32 %v997, %v1051
        %v1054 = vadd.f32 %v1053, %v1031
        %v1056 = vrot.slane %v1054, 7
        %v1058 = vmul.f32 %v997, %v1056
        %v1059 = vadd.f32 %v1058, %v1031
        %v1061 = vrot.slane %v1059, 7
        %v1063 = vmul.f32 %v997, %v1061
        %v1064 = vadd.f32 %v1063, %v1031
        %v1066 = vrot.slane %v1064, 7
        %v1068 = vmul.f32 %v997, %v1066
        %v1069 = vadd.f32 %v1068, %v1031
        %v1070 = vmul.f32 %v999, 0.0
        %v1071 = vadd.f32 %v1070, %v1032
        %v1073 = vrot.slane %v1071, 7
        %v1075 = vmul.f32 %v999, %v1073
        %v1076 = vadd.f32 %v1075, %v1032
        %v1078 = vrot.slane %v1076, 7
        %v1080 = vmul.f32 %v999, %v1078
        %v1081 = vadd.f32 %v1080, %v1032
        %v1083 = vrot.slane %v1081, 7
        %v1085 = vmul.f32 %v999, %v1083
        %v1086 = vadd.f32 %v1085, %v1032
        %v1088 = vrot.slane %v1086, 7
        %v1090 = vmul.f32 %v999, %v1088
        %v1091 = vadd.f32 %v1090, %v1032
        %v1093 = vrot.slane %v1091, 7
        %v1095 = vmul.f32 %v999, %v1093
        %v1096 = vadd.f32 %v1095, %v1032
        %v1098 = vrot.slane %v1096, 7
        %v1100 = vmul.f32 %v999, %v1098
        %v1101 = vadd.f32 %v1100, %v1032
        %v1103 = vrot.slane %v1101, 7
        %v1105 = vmul.f32 %v999, %v1103
        %v1106 = vadd.f32 %v1105, %v1032
        %v1107 = vsel %vm874, %v1034, %v1039
        %vm1108 = vcmask 1041408
        %v1109 = vsel %vm1108, %v1107, %v1044
        %vm1110 = vcmask 1042432
        %v1111 = vsel %vm1110, %v1109, %v1049
        %vm1112 = vcmask 1043456
        %v1113 = vsel %vm1112, %v1111, %v1054
        %vm1114 = vcmask 1044480
        %v1115 = vsel %vm1114, %v1113, %v1059
        %vm1116 = vcmask 1045504
        %v1117 = vsel %vm1116, %v1115, %v1064
        %vm1118 = vcmask 1046528
        %v1119 = vsel %vm1118, %v1117, %v1069
        %v1120 = vsel %vm874, %v1071, %v1076
        %v1121 = vsel %vm1108, %v1120, %v1081
        %v1122 = vsel %vm1110, %v1121, %v1086
        %v1123 = vsel %vm1112, %v1122, %v1091
        %v1124 = vsel %vm1114, %v1123, %v1096
        %v1125 = vsel %vm1116, %v1124, %v1101
        %v1126 = vsel %vm1118, %v1125, %v1106
        %1127 = vset.pattern.permute.xlu0 6
        %1128 = vperm.xlu0 %1127, %v855
        %v1129 = vpop.permute.xlu0 %1128
        %1131 = vset.pattern.permute.xlu0 6
        %1132 = vperm.xlu0 %1131, %v858
        %v1133 = vpop.permute.xlu0 %1132
        %v1135 = vmul.f32 %v1129, %v1119
        %v1136 = vmul.f32 %v1133, %v1126
        %v1137 = vadd.f32 %v1019, %v1135
        %v1138 = vadd.f32 %v1020, %v1136
        %1139 = vset.pattern.permute.xlu0 3
        %1140 = vperm.xlu0 %1139, %v855
        %v1141 = vpop.permute.xlu0 %1140
        %1143 = vset.pattern.permute.xlu0 3
        %1144 = vperm.xlu0 %1143, %v858
        %v1145 = vpop.permute.xlu0 %1144
        %v1147 = vmul.f32 %v941, %v1141
        %v1148 = vmul.f32 %v942, %v1145
        %v1149 = vmul.f32 %v1001, 0.0
        %v1150 = vadd.f32 %v1149, %v1147
        %v1152 = vrot.slane %v1150, 7
        %v1154 = vmul.f32 %v1001, %v1152
        %v1155 = vadd.f32 %v1154, %v1147
        %v1157 = vrot.slane %v1155, 7
        %v1159 = vmul.f32 %v1001, %v1157
        %v1160 = vadd.f32 %v1159, %v1147
        %v1162 = vrot.slane %v1160, 7
        %v1164 = vmul.f32 %v1001, %v1162
        %v1165 = vadd.f32 %v1164, %v1147
        %v1167 = vrot.slane %v1165, 7
        %v1169 = vmul.f32 %v1001, %v1167
        %v1170 = vadd.f32 %v1169, %v1147
        %v1172 = vrot.slane %v1170, 7
        %v1174 = vmul.f32 %v1001, %v1172
        %v1175 = vadd.f32 %v1174, %v1147
        %v1177 = vrot.slane %v1175, 7
        %v1179 = vmul.f32 %v1001, %v1177
        %v1180 = vadd.f32 %v1179, %v1147
        %v1182 = vrot.slane %v1180, 7
        %v1184 = vmul.f32 %v1001, %v1182
        %v1185 = vadd.f32 %v1184, %v1147
        %v1186 = vmul.f32 %v1003, 0.0
        %v1187 = vadd.f32 %v1186, %v1148
        %v1189 = vrot.slane %v1187, 7
        %v1191 = vmul.f32 %v1003, %v1189
        %v1192 = vadd.f32 %v1191, %v1148
        %v1194 = vrot.slane %v1192, 7
        %v1196 = vmul.f32 %v1003, %v1194
        %v1197 = vadd.f32 %v1196, %v1148
        %v1199 = vrot.slane %v1197, 7
        %v1201 = vmul.f32 %v1003, %v1199
        %v1202 = vadd.f32 %v1201, %v1148
        %v1204 = vrot.slane %v1202, 7
        %v1206 = vmul.f32 %v1003, %v1204
        %v1207 = vadd.f32 %v1206, %v1148
        %v1209 = vrot.slane %v1207, 7
        %v1211 = vmul.f32 %v1003, %v1209
        %v1212 = vadd.f32 %v1211, %v1148
        %v1214 = vrot.slane %v1212, 7
        %v1216 = vmul.f32 %v1003, %v1214
        %v1217 = vadd.f32 %v1216, %v1148
        %v1219 = vrot.slane %v1217, 7
        %v1221 = vmul.f32 %v1003, %v1219
        %v1222 = vadd.f32 %v1221, %v1148
        %v1223 = vsel %vm874, %v1150, %v1155
        %v1224 = vsel %vm1108, %v1223, %v1160
        %v1225 = vsel %vm1110, %v1224, %v1165
        %v1226 = vsel %vm1112, %v1225, %v1170
        %v1227 = vsel %vm1114, %v1226, %v1175
        %v1228 = vsel %vm1116, %v1227, %v1180
        %v1229 = vsel %vm1118, %v1228, %v1185
        %v1230 = vsel %vm874, %v1187, %v1192
        %v1231 = vsel %vm1108, %v1230, %v1197
        %v1232 = vsel %vm1110, %v1231, %v1202
        %v1233 = vsel %vm1112, %v1232, %v1207
        %v1234 = vsel %vm1114, %v1233, %v1212
        %v1235 = vsel %vm1116, %v1234, %v1217
        %v1236 = vsel %vm1118, %v1235, %v1222
        %1237 = vset.pattern.permute.xlu0 7
        %1238 = vperm.xlu0 %1237, %v855
        %v1239 = vpop.permute.xlu0 %1238
        %1241 = vset.pattern.permute.xlu0 7
        %1242 = vperm.xlu0 %1241, %v858
        %v1243 = vpop.permute.xlu0 %1242
        %v1245 = vmul.f32 %v1239, %v1229
        %v1246 = vmul.f32 %v1243, %v1236
        %v1247 = vadd.f32 %v1137, %v1245
        %v1248 = vadd.f32 %v1138, %v1246
        %1249 = vset.pattern.permute.xlu0 4
        %1250 = vperm.xlu0 %1249, %v855
        %v1251 = vpop.permute.xlu0 %1250
        %1253 = vset.pattern.permute.xlu0 4
        %1254 = vperm.xlu0 %1253, %v858
        %v1255 = vpop.permute.xlu0 %1254
        %v1257 = vmul.f32 %v941, %v1251
        %v1258 = vmul.f32 %v942, %v1255
        %v1259 = vmul.f32 %v1005, 0.0
        %v1260 = vadd.f32 %v1259, %v1257
        %v1262 = vrot.slane %v1260, 7
        %v1264 = vmul.f32 %v1005, %v1262
        %v1265 = vadd.f32 %v1264, %v1257
        %v1267 = vrot.slane %v1265, 7
        %v1269 = vmul.f32 %v1005, %v1267
        %v1270 = vadd.f32 %v1269, %v1257
        %v1272 = vrot.slane %v1270, 7
        %v1274 = vmul.f32 %v1005, %v1272
        %v1275 = vadd.f32 %v1274, %v1257
        %v1277 = vrot.slane %v1275, 7
        %v1279 = vmul.f32 %v1005, %v1277
        %v1280 = vadd.f32 %v1279, %v1257
        %v1282 = vrot.slane %v1280, 7
        %v1284 = vmul.f32 %v1005, %v1282
        %v1285 = vadd.f32 %v1284, %v1257
        %v1287 = vrot.slane %v1285, 7
        %v1289 = vmul.f32 %v1005, %v1287
        %v1290 = vadd.f32 %v1289, %v1257
        %v1292 = vrot.slane %v1290, 7
        %v1294 = vmul.f32 %v1005, %v1292
        %v1295 = vadd.f32 %v1294, %v1257
        %v1296 = vmul.f32 %v1007, 0.0
        %v1297 = vadd.f32 %v1296, %v1258
        %v1299 = vrot.slane %v1297, 7
        %v1301 = vmul.f32 %v1007, %v1299
        %v1302 = vadd.f32 %v1301, %v1258
        %v1304 = vrot.slane %v1302, 7
        %v1306 = vmul.f32 %v1007, %v1304
        %v1307 = vadd.f32 %v1306, %v1258
        %v1309 = vrot.slane %v1307, 7
        %v1311 = vmul.f32 %v1007, %v1309
        %v1312 = vadd.f32 %v1311, %v1258
        %v1314 = vrot.slane %v1312, 7
        %v1316 = vmul.f32 %v1007, %v1314
        %v1317 = vadd.f32 %v1316, %v1258
        %v1319 = vrot.slane %v1317, 7
        %v1321 = vmul.f32 %v1007, %v1319
        %v1322 = vadd.f32 %v1321, %v1258
        %v1324 = vrot.slane %v1322, 7
        %v1326 = vmul.f32 %v1007, %v1324
        %v1327 = vadd.f32 %v1326, %v1258
        %v1329 = vrot.slane %v1327, 7
        %v1331 = vmul.f32 %v1007, %v1329
        %v1332 = vadd.f32 %v1331, %v1258
        %v1333 = vsel %vm874, %v1260, %v1265
        %v1334 = vsel %vm1108, %v1333, %v1270
        %v1335 = vsel %vm1110, %v1334, %v1275
        %v1336 = vsel %vm1112, %v1335, %v1280
        %v1337 = vsel %vm1114, %v1336, %v1285
        %v1338 = vsel %vm1116, %v1337, %v1290
        %v1339 = vsel %vm1118, %v1338, %v1295
        %v1340 = vsel %vm874, %v1297, %v1302
        %v1341 = vsel %vm1108, %v1340, %v1307
        %v1342 = vsel %vm1110, %v1341, %v1312
        %v1343 = vsel %vm1112, %v1342, %v1317
        %v1344 = vsel %vm1114, %v1343, %v1322
        %v1345 = vsel %vm1116, %v1344, %v1327
        %v1346 = vsel %vm1118, %v1345, %v1332
        %1347 = vset.pattern.permute.xlu0 8
        %1348 = vperm.xlu0 %1347, %v855
        %v1349 = vpop.permute.xlu0 %1348
        %1351 = vset.pattern.permute.xlu0 8
        %1352 = vperm.xlu0 %1351, %v858
        %v1353 = vpop.permute.xlu0 %1352
        %v1355 = vmul.f32 %v1349, %v1339
        %v1356 = vmul.f32 %v1353, %v1346
        %v1357 = vadd.f32 %v1247, %v1355
        %v1358 = vadd.f32 %v1248, %v1356
        %1359 = vset.pattern.permute.xlu0 5
        %1360 = vperm.xlu0 %1359, %v855
        %v1361 = vpop.permute.xlu0 %1360
        %1363 = vset.pattern.permute.xlu0 5
        %1364 = vperm.xlu0 %1363, %v858
        %v1365 = vpop.permute.xlu0 %1364
        %v1367 = vmul.f32 %v941, %v1361
        %v1368 = vmul.f32 %v942, %v1365
        %v1369 = vmul.f32 %v1009, 0.0
        %v1370 = vadd.f32 %v1369, %v1367
        %v1372 = vrot.slane %v1370, 7
        %v1374 = vmul.f32 %v1009, %v1372
        %v1375 = vadd.f32 %v1374, %v1367
        %v1377 = vrot.slane %v1375, 7
        %v1379 = vmul.f32 %v1009, %v1377
        %v1380 = vadd.f32 %v1379, %v1367
        %v1382 = vrot.slane %v1380, 7
        %v1384 = vmul.f32 %v1009, %v1382
        %v1385 = vadd.f32 %v1384, %v1367
        %v1387 = vrot.slane %v1385, 7
        %v1389 = vmul.f32 %v1009, %v1387
        %v1390 = vadd.f32 %v1389, %v1367
        %v1392 = vrot.slane %v1390, 7
        %v1394 = vmul.f32 %v1009, %v1392
        %v1395 = vadd.f32 %v1394, %v1367
        %v1397 = vrot.slane %v1395, 7
        %v1399 = vmul.f32 %v1009, %v1397
        %v1400 = vadd.f32 %v1399, %v1367
        %v1402 = vrot.slane %v1400, 7
        %v1404 = vmul.f32 %v1009, %v1402
        %v1405 = vadd.f32 %v1404, %v1367
        %v1406 = vmul.f32 %v1011, 0.0
        %v1407 = vadd.f32 %v1406, %v1368
        %v1409 = vrot.slane %v1407, 7
        %v1411 = vmul.f32 %v1011, %v1409
        %v1412 = vadd.f32 %v1411, %v1368
        %v1414 = vrot.slane %v1412, 7
        %v1416 = vmul.f32 %v1011, %v1414
        %v1417 = vadd.f32 %v1416, %v1368
        %v1419 = vrot.slane %v1417, 7
        %v1421 = vmul.f32 %v1011, %v1419
        %v1422 = vadd.f32 %v1421, %v1368
        %v1424 = vrot.slane %v1422, 7
        %v1426 = vmul.f32 %v1011, %v1424
        %v1427 = vadd.f32 %v1426, %v1368
        %v1429 = vrot.slane %v1427, 7
        %v1431 = vmul.f32 %v1011, %v1429
        %v1432 = vadd.f32 %v1431, %v1368
        %v1434 = vrot.slane %v1432, 7
        %v1436 = vmul.f32 %v1011, %v1434
        %v1437 = vadd.f32 %v1436, %v1368
        %v1439 = vrot.slane %v1437, 7
        %v1441 = vmul.f32 %v1011, %v1439
        %v1442 = vadd.f32 %v1441, %v1368
        %v1443 = vsel %vm874, %v1370, %v1375
        %v1444 = vsel %vm1108, %v1443, %v1380
        %v1445 = vsel %vm1110, %v1444, %v1385
        %v1446 = vsel %vm1112, %v1445, %v1390
        %v1447 = vsel %vm1114, %v1446, %v1395
        %v1448 = vsel %vm1116, %v1447, %v1400
        %v1449 = vsel %vm1118, %v1448, %v1405
        %v1450 = vsel %vm874, %v1407, %v1412
        %v1451 = vsel %vm1108, %v1450, %v1417
        %v1452 = vsel %vm1110, %v1451, %v1422
        %v1453 = vsel %vm1112, %v1452, %v1427
        %v1454 = vsel %vm1114, %v1453, %v1432
        %v1455 = vsel %vm1116, %v1454, %v1437
        %v1456 = vsel %vm1118, %v1455, %v1442
        %1457 = vset.pattern.permute.xlu0 9
        %1458 = vperm.xlu0 %1457, %v855
        %v1459 = vpop.permute.xlu0 %1458
        %1461 = vset.pattern.permute.xlu0 9
        %1462 = vperm.xlu0 %1461, %v858
        %v1463 = vpop.permute.xlu0 %1462
        %v1465 = vmul.f32 %v1459, %v1449
        %v1466 = vmul.f32 %v1463, %v1456
        %v1467 = vadd.f32 %v1357, %v1465
        %v1468 = vadd.f32 %v1358, %v1466
        %v1469 = vmul.f32 %v701, 0.5
        %v1470 = vmul.f32 %v704, 0.5
        %v1471 = vtanh.pop %v1469
        %v1472 = vtanh.pop %v1470
        %v1473 = vadd.f32 %v1471, 1.0
        %v1474 = vadd.f32 %v1472, 1.0
        %v1475 = vmul.f32 %v1473, 0.5
        %v1476 = vmul.f32 %v1474, 0.5
        %v1477 = vmul.f32 %v701, %v1475
        %v1478 = vmul.f32 %v704, %v1476
        %1481 = vrot.lane.b32.xlu0 %v1477, 64
        %v1482 = vpop.permute.xlu0 %1481
        %1483 = vrot.lane.b32.xlu0 %v1478, 64
        %v1484 = vpop.permute.xlu0 %1483
        %v1487 = vmul.f32 %v1467, %v1482
        %v1488 = vmul.f32 %v1468, %v1484
        %v1489 = vpack.c.bf16 %v1488, %v1487
        %v1490 = vld [vmem:[%s597] sm:$0xf]
        %v1491 = vld [vmem:[%s597 + $0x4] sm:$0xf]
        %v1492 = vld [vmem:[%s597 + $0x8] sm:$0xf]
        %v1493 = vld [vmem:[%s597 + $0xc] sm:$0xf]
        %v1494 = vld [vmem:[%s597 + $0x10] sm:$0xf]
        %v1495 = vld [vmem:[%s597 + $0x14] sm:$0xf]
        %v1496 = vld [vmem:[%s597 + $0x18] sm:$0xf]
        %v1497 = vld [vmem:[%s597 + $0x1c] sm:$0xf]
        %v1506 = vunpack.c.l.b16 %v1490
        %v1507 = vunpack.c.l.b16 %v1491
        %v1508 = vunpack.c.l.b16 %v1492
        %v1509 = vunpack.c.l.b16 %v1493
        %v1510 = vunpack.c.l.b16 %v1494
        %v1511 = vunpack.c.l.b16 %v1495
        %v1512 = vunpack.c.l.b16 %v1496
        %v1513 = vunpack.c.l.b16 %v1497
        %v1514 = vpack.c.b16 %v1507, %v1506
        %v1515 = vpack.c.b16 %v1509, %v1508
        %v1516 = vpack.c.b16 %v1511, %v1510
        %v1517 = vpack.c.b16 %v1513, %v1512
        %v1523 = vsel %vm816, %v1489, 0
        %1525 = vmatprep.subr.bf16.mxu0 0
        %1526 = vmatpush1.bf16.msra.mxu0 %v1514
        %1527 = vmatprep.subr.bf16.mxu0 0
        %1528 = vmatpush1.bf16.msra.mxu0 %v1515
        %1529 = vmatprep.subr.bf16.mxu0 0
        %1530 = vmatpush1.bf16.msra.mxu0 %v1516
        %1531 = vmatprep.subr.bf16.mxu0 0
        %1532 = vmatpush1.bf16.msra.mxu0 %v1517
        %1533 = vmatprep.subr.bf16.mxu0 0
        %1534 = vmatpush1.bf16.msra.mxu0 0
        %1535 = vmatprep.subr.bf16.mxu0 0
        %1536 = vmatpush1.bf16.msra.mxu0 0
        %1537 = vmatprep.subr.bf16.mxu0 0
        %1538 = vmatpush1.bf16.msra.mxu0 0
        %1539 = vmatprep.subr.bf16.mxu0 0
        %1540 = vmatpush1.bf16.msra.mxu0 0
        %1541 = vmatprep.subr.bf16.mxu0 0
        %1542 = vmatpush1.bf16.msra.mxu0 0
        %1543 = vmatprep.subr.bf16.mxu0 0
        %1544 = vmatpush1.bf16.msra.mxu0 0
        %1545 = vmatprep.subr.bf16.mxu0 0
        %1546 = vmatpush1.bf16.msra.mxu0 0
        %1547 = vmatprep.subr.bf16.mxu0 0
        %1548 = vmatpush1.bf16.msra.mxu0 0
        %1549 = vmatprep.subr.bf16.mxu0 0
        %1550 = vmatpush1.bf16.msra.mxu0 0
        %1551 = vmatprep.subr.bf16.mxu0 0
        %1552 = vmatpush1.bf16.msra.mxu0 0
        %1553 = vmatprep.subr.bf16.mxu0 0
        %1554 = vmatpush1.bf16.msra.mxu0 0
        %1555 = vmatprep.subr.bf16.mxu0 0
        %1556 = vmatpush1.bf16.msra.mxu0 0
        %1557 = vmatprep.mubr.bf16.mxu0 0
        %1558 = vmatmul.mubr.bf16.gmra.mrb[0].mxu0 %v1523
        %v1559 = vpop.f32.mrb[0].mxu0
        %v1560 = vadd.f32 0.0, %v1559
        %v1561 = vpop.f32.mrb[0].mxu0
        %v1562 = vpop.f32.mrb[0].mxu0
        %v1563 = vadd.f32 0.0, %v1562
        %v1564 = vpop.f32.mrb[0].mxu0
        %1565 = vdwg.mxu0
        %v1566 = vadd.f32 %v610, %v1560
        %v1567 = vadd.f32 %v611, %v1563
        %1568 = vst.msk [vmem:[#allocation2] sm:$0xff] %vm614, %v1566
        %1569 = vst.msk [vmem:[#allocation2 + $0x8] sm:$0xff] %vm614, %v1567
        %p1570 = scmp.eq.s32.totalorder %s26, 1
        // Predicated region
        $region81: #{tpu_custom_call.1} parent=75 // pred_check
          %p1571 = pneg %p1570
        $region82: #{tpu_custom_call.1} parent=75 // pred_check_branch
          %1573 = sbr.rel (%p1571) target = $region84
        $region83: #{tpu_custom_call.1} parent=75 // pred_region
          %v1574 = vmul.f32 %v1566, %v1566
          %v1575 = vmul.f32 %v1567, %v1567
          %v1576 = vsel %vm614, %v1574, 0.0
          %1577 = vadd.xlane.f32.xlu0 %v1576
          %v1578 = vpop.xlane.xlu0 %1577
          %v1579 = vsel %vm614, %v1575, 0.0
          %1580 = vadd.xlane.f32.xlu0 %v1579
          %v1581 = vpop.xlane.xlu0 %1580
          %v1582 = vmul.f32 %v1578, %v621
          %v1583 = vmul.f32 %v1581, %v621
          %v1584 = vadd.f32 %v1582, 1e-05
          %v1585 = vadd.f32 %v1583, 1e-05
          %v1586 = vrsqrt.pop %v1584
          %v1587 = vrsqrt.pop %v1585
          %v1588 = vmul.f32 %v1566, %v1586
          %v1589 = vmul.f32 %v1567, %v1587
          %v1590 = vld [vmem:[%s2] sm:$0x1]
          %v1592 = vlaneseq
          %v1593 = vshrl.u32 %v1592, 7
          %v1594 = vsub.s32 0, %v1593
          %v1595 = vrot.slane %v1590, %v1594
          %v1597 = vmul.f32 %v1588, %v1595
          %v1598 = vmul.f32 %v1589, %v1595
          %v1599 = vpack.c.bf16 %v1598, %v1597
          %v1600 = vld [vmem:[%s3] sm:$0xf]
          %v1601 = vld [vmem:[%s3 + $0x4] sm:$0xf]
          %v1602 = vld [vmem:[%s3 + $0x8] sm:$0xf]
          %v1603 = vld [vmem:[%s3 + $0xc] sm:$0xf]
          %v1608 = vunpack.c.l.b16 %v1600
          %v1609 = vunpack.c.l.b16 %v1601
          %v1610 = vunpack.c.l.b16 %v1602
          %v1611 = vunpack.c.l.b16 %v1603
          %v1612 = vpack.c.b16 %v1609, %v1608
          %v1613 = vpack.c.b16 %v1611, %v1610
          %v1617 = vsel %vm614, %v1599, 0
          %1619 = vmatprep.subr.bf16.mxu0 0
          %1620 = vmatpush1.bf16.msra.mxu0 %v1612
          %1621 = vmatprep.subr.bf16.mxu0 0
          %1622 = vmatpush1.bf16.msra.mxu0 %v1613
          %1623 = vmatprep.subr.bf16.mxu0 0
          %1624 = vmatpush1.bf16.msra.mxu0 0
          %1625 = vmatprep.subr.bf16.mxu0 0
          %1626 = vmatpush1.bf16.msra.mxu0 0
          %1627 = vmatprep.subr.bf16.mxu0 0
          %1628 = vmatpush1.bf16.msra.mxu0 0
          %1629 = vmatprep.subr.bf16.mxu0 0
          %1630 = vmatpush1.bf16.msra.mxu0 0
          %1631 = vmatprep.subr.bf16.mxu0 0
          %1632 = vmatpush1.bf16.msra.mxu0 0
          %1633 = vmatprep.subr.bf16.mxu0 0
          %1634 = vmatpush1.bf16.msra.mxu0 0
          %1635 = vmatprep.subr.bf16.mxu0 0
          %1636 = vmatpush1.bf16.msra.mxu0 0
          %1637 = vmatprep.subr.bf16.mxu0 0
          %1638 = vmatpush1.bf16.msra.mxu0 0
          %1639 = vmatprep.subr.bf16.mxu0 0
          %1640 = vmatpush1.bf16.msra.mxu0 0
          %1641 = vmatprep.subr.bf16.mxu0 0
          %1642 = vmatpush1.bf16.msra.mxu0 0
          %1643 = vmatprep.subr.bf16.mxu0 0
          %1644 = vmatpush1.bf16.msra.mxu0 0
          %1645 = vmatprep.subr.bf16.mxu0 0
          %1646 = vmatpush1.bf16.msra.mxu0 0
          %1647 = vmatprep.subr.bf16.mxu0 0
          %1648 = vmatpush1.bf16.msra.mxu0 0
          %1649 = vmatprep.subr.bf16.mxu0 0
          %1650 = vmatpush1.bf16.msra.mxu0 0
          %1651 = vmatprep.mubr.bf16.mxu0 0
          %1652 = vmatmul.mubr.bf16.gmra.mrb[0].mxu0 %v1617
          %v1653 = vpop.f32.mrb[0].mxu0
          %v1654 = vadd.f32 0.0, %v1653
          %v1655 = vpop.f32.mrb[0].mxu0
          %v1656 = vpop.f32.mrb[0].mxu0
          %v1657 = vadd.f32 0.0, %v1656
          %v1658 = vpop.f32.mrb[0].mxu0
          %1659 = vdwg.mxu0
          %1660 = vst [vmem:[#allocation3] sm:$0xff] %v1654
          %1661 = vst [vmem:[#allocation3 + $0x8] sm:$0xff] %v1657
        $region84: #{tpu_custom_call.1} parent=75 // pred_fallthru
          _
        // Predicated region
        $region85: #{tpu_custom_call.1} parent=75 // pred_check
          %p1662 = pneg %p383
        $region86: #{tpu_custom_call.1} parent=75 // pred_check_branch
          %1664 = sbr.rel (%p1662) target = $region88
        $region87: #{tpu_custom_call.1} parent=75 // pred_region
          %s1666 = ssub.s32 256, 256
          %1667 = vsyncadd [#allocation4], %s1666
          %s1668 = sshll.u32 [#allocation3], 4
          %s1669 = int_to_ptr.vmem [resolvable:$true] %s1668
          %1674 = dma.vmem_to_hbm [thread:$0]  %s1669, 256, %s14, [#allocation4], 128, 128, 8
        $region88: #{tpu_custom_call.1} parent=75 // pred_fallthru
          _
        // Predicated region
        $region89: #{tpu_custom_call.1} parent=75 // pred_check
          %p1675 = pneg %p383
        $region90: #{tpu_custom_call.1} parent=75 // pred_check_branch
          %1677 = sbr.rel (%p1675) target = $region92
        $region91: #{tpu_custom_call.1} parent=75 // pred_region
          %1678 = dma.done [#allocation4], 256
        $region92: #{tpu_custom_call.1} parent=75 // pred_fallthru
          _
      $region76: #{tpu_custom_call.1} parent=5 // pred_fallthru
        _
      %p1679 = scmp.le.s32.totalorder 2, %s21
      // Predicated region
      $region93: #{tpu_custom_call.1} parent=5 // pred_check
        %p1680 = pneg %p1679
      $region94: #{tpu_custom_call.1} parent=5 // pred_check_branch
        %1682 = sbr.rel (%p1680) target = $region96
      $region95: #{tpu_custom_call.1} parent=5 // pred_region
        %s1683 = ssub.s32 %s21, 2
      $region96: #{tpu_custom_call.1} parent=5 // pred_fallthru
        _
    $region6: #{tpu_custom_call.1} parent=1 // loop_footer
      %s25 = sadd.s32 1, %s21
    $region7: #{tpu_custom_call.1} parent=1 // loop_footer_branch
      %20 = sbr.rel target = $region3
    $region8: #{tpu_custom_call.1} parent=1 // loop_exit
      _
    %1684 = vsyncpa [#allocation4], 1
    %s1685 = scalar_lea.sflag [#allocation4], 1
    %1686 = vsyncpa %s1685, 1

</llo_original>
